<compile_context>
chip_gen: v6e
topology: v6e:2x2x1
jax: 0.10.0
libtpu: 0.0.40
codegen_flags: <defaults>
</compile_context>

<pallas_src>
import functools

import jax
import jax.numpy as jnp
from jax.experimental import pallas as pl
from jax.experimental.pallas import tpu as pltpu

GROUP = 4  # |C4|


def _round_up(x, m):
    return (x + m - 1) // m * m


# ----------------------------- Pallas kernel -------------------------------


def fused_forward_kernel(x_ref, w1_ref, b1_ref, w2_ref, b2_ref, wf_ref, bf_ref,
                         o_ref, *, ncls, g1pad, g2pad):
    """Fused GEquivariantNN forward for one batch tile.

    x_ref : (TB, cin*h*w)           f32, native NCHW row order (bf16 cast done on-chip)
    w1_ref: (cin*h*w, GROUP*g1pad)  bf16 lowered-conv slab; columns (group, pixel, cout),
                                    each group block zero-padded to a 128-lane multiple
    b1_ref: (1, g1pad)              f32 (bias tiled over pixels; zeros in pad lanes)
    w2_ref: (g1pad, GROUP*g2pad)    bf16; rows follow h1's lane layout (zero pad rows)
    b2_ref: (1, g2pad)              f32
    wf_ref: (g2pad, nfpad)          bf16 zero-padded Linear weight
    bf_ref: (1, nfpad)              f32
    o_ref : (TB, ncls)              f32, final logit shape
    """
    x = x_ref[...].astype(jnp.bfloat16)

    # ---- layer 1: one lane-dense matmul covering all 9 pixels x 4 rotations ----
    acc1 = jnp.dot(x, w1_ref[...], preferred_element_type=jnp.float32)  # (TB, 4*g1pad)
    h1 = acc1[:, 0:g1pad]
    for g in range(1, GROUP):  # group max over 128-lane-aligned slices (pure VPU)
        h1 = jnp.maximum(h1, acc1[:, g * g1pad:(g + 1) * g1pad])
    h1 = jnp.maximum(h1 + b1_ref[...], 0.0).astype(jnp.bfloat16)        # (TB, g1pad)

    # ---- layer 2: h1 consumed in place (w2 rows pre-permuted / zero-padded) ----
    acc2 = jnp.dot(h1, w2_ref[...], preferred_element_type=jnp.float32)  # (TB, 4*g2pad)
    h2 = acc2[:, 0:g2pad]
    for g in range(1, GROUP):
        h2 = jnp.maximum(h2, acc2[:, g * g2pad:(g + 1) * g2pad])
    h2 = jnp.maximum(h2 + b2_ref[...], 0.0).astype(jnp.bfloat16)        # (TB, g2pad)

    # ---- linear head ----
    out = jnp.dot(h2, wf_ref[...], preferred_element_type=jnp.float32) + bf_ref[...]
    o_ref[...] = out[:, 0:ncls].astype(o_ref.dtype)


# ------------------------- host-side weight packing --------------------------


def _lowered_gconv1_slab(w_hwio, h, w, g1pad):
    """Lowered-conv slab (cin*h*w, GROUP*g1pad) bf16.

    Rows follow the native NCHW flatten order (c, y, x) so the kernel consumes
    x_nchw.reshape(n, c*h*w) directly.  Columns are (group, pixel, cout), group-major,
    with each group block zero-padded to `g1pad` lanes (128-aligned group-max slices).
    Rows outside a pixel's receptive field are zero.
    """
    k, _, cin, cout = w_hwio.shape
    oh, ow = h - k + 1, w - k + 1
    group_slabs = []
    for g in range(GROUP):
        wg = jnp.transpose(jnp.rot90(w_hwio, k=g, axes=(0, 1)), (2, 0, 1, 3))  # (cin,k,k,cout)
        cols = []
        for oy in range(oh):
            for ox in range(ow):
                full = jnp.pad(wg, ((0, 0), (oy, h - k - oy), (ox, w - k - ox), (0, 0)))
                cols.append(full.reshape(cin * h * w, cout))
        slab = jnp.concatenate(cols, axis=1)                 # (cin*h*w, oh*ow*cout)
        group_slabs.append(jnp.pad(slab, ((0, 0), (0, g1pad - oh * ow * cout))))
    return jnp.concatenate(group_slabs, axis=1).astype(jnp.bfloat16)


def _lowered_gconv2_slab(w_hwio, rows, g2pad):
    """Second-layer slab (rows, GROUP*g2pad) bf16 for the 1x1-output group conv.

    Row order equals h1's (pixel, channel) lane order (identical to the HWIO flatten
    because the 3x3 map is exactly one patch); zero rows absorb h1's alignment pad.
    Columns are group-major, each group block zero-padded to `g2pad` lanes.
    """
    k, _, cin, cout = w_hwio.shape
    slabs = []
    for g in range(GROUP):
        wg = jnp.rot90(w_hwio, k=g, axes=(0, 1)).reshape(k * k * cin, cout)
        slabs.append(jnp.pad(wg, ((0, rows - k * k * cin), (0, g2pad - cout))))
    return jnp.concatenate(slabs, axis=1).astype(jnp.bfloat16)


# ------------------------------ JAX wrapper ----------------------------------


@jax.jit
def gequivariant_nn_forward(x_nchw, params):
    """Forward pass matching GEquivariantNN.forward (PyTorch NCHW input)."""
    n, cin, h, w = x_nchw.shape
    ksize = params["w1"].shape[0]
    c1 = params["w1"].shape[3]
    c2 = params["w2"].shape[3]
    ncls = params["wf"].shape[1]
    assert h == w and h == 2 * ksize - 1, (
        "spatial must reduce to 1x1 after two valid convs (5x5 for k=3)")
    oh = h - ksize + 1

    g1pad = _round_up(oh * oh * c1, 128)   # 288 -> 384
    g2pad = _round_up(c2, 128)             # 64  -> 128
    nfpad = _round_up(ncls, 128)
    k1 = cin * h * w

    # Native NCHW row order, original dtype: the kernel does the bf16 cast, so the
    # input makes exactly one HBM pass (no wrapper transpose / cast round-trip).
    x = x_nchw.reshape(n, k1)

    # Batch tiling.  TB up to 1024 rows (per-step overhead amortized, intermediates
    # ~11 MB << 48 MiB scoped VMEM).  For n > 8, cap TB so there are >= 2 grid steps
    # and v7x's two TensorCores both get "parallel" batch tiles.
    tb = min(1024, _round_up(n, 8))
    if n > 8:
        tb = min(tb, _round_up(-(-n // 2), 8))
    n_pad = _round_up(n, tb)
    if n_pad != n:
        x = jnp.pad(x, ((0, n_pad - n), (0, 0)))

    # VMEM-resident parameters (constant index_maps; a few hundred KB total).
    w1 = _lowered_gconv1_slab(params["w1"], h, w, g1pad)        # (cin*h*w, 4*g1pad)
    w2 = _lowered_gconv2_slab(params["w2"], g1pad, g2pad)       # (g1pad,   4*g2pad)
    wf = jnp.pad(params["wf"],
                 ((0, g2pad - c2), (0, nfpad - ncls))).astype(jnp.bfloat16)
    b1r = jnp.pad(jnp.tile(params["b1"], oh * oh),
                  (0, g1pad - oh * oh * c1)).reshape(1, g1pad).astype(jnp.float32)
    b2r = jnp.pad(params["b2"], (0, g2pad - c2)).reshape(1, g2pad).astype(jnp.float32)
    bfr = jnp.pad(params["bf"], (0, nfpad - ncls)).reshape(1, nfpad).astype(jnp.float32)

    kernel = functools.partial(fused_forward_kernel, ncls=ncls,
                               g1pad=g1pad, g2pad=g2pad)
    const = lambda i: (0, 0)  # weights/biases: same block for every grid step

    out = pl.pallas_call(
        kernel,
        out_shape=jax.ShapeDtypeStruct((n_pad, ncls), jnp.float32),
        grid=(n_pad // tb,),
        in_specs=[
            pl.BlockSpec((tb, k1), lambda i: (i, 0)),
            pl.BlockSpec(w1.shape, const),
            pl.BlockSpec(b1r.shape, const),
            pl.BlockSpec(w2.shape, const),
            pl.BlockSpec(b2r.shape, const),
            pl.BlockSpec(wf.shape, const),
            pl.BlockSpec(bfr.shape, const),
        ],
        out_specs=pl.BlockSpec((tb, ncls), lambda i: (i, 0)),
        compiler_params=pltpu.CompilerParams(
            dimension_semantics=("parallel",),
            vmem_limit_bytes=48 * 1024 * 1024),
    )(x, w1, b1r, w2, b2r, wf, bfr)

    return out if n_pad == n else out[:n]


def init_params(key, c_in, num_classes):
    k1, k2, k3 = jax.random.split(key, 3)
    scale1 = 1.0 / jnp.sqrt(9 * c_in)
    scale2 = 1.0 / jnp.sqrt(9 * 32)
    scale3 = 1.0 / jnp.sqrt(64)
    return {
        "w1": jax.random.normal(k1, (3, 3, c_in, 32), jnp.float32) * scale1,
        "b1": jnp.zeros((32,), jnp.float32),
        "w2": jax.random.normal(k2, (3, 3, 32, 64), jnp.float32) * scale2,
        "b2": jnp.zeros((64,), jnp.float32),
        "wf": jax.random.normal(k3, (64, num_classes), jnp.float32) * scale3,
        "bf": jnp.zeros((num_classes,), jnp.float32),
    }


# --------------------------- pure-JAX reference -----------------------------


def _ref_gconv_c4(x_nhwc, w_hwio, b):
    outs = []
    for g in range(GROUP):
        wg = jnp.rot90(w_hwio, k=g, axes=(0, 1))
        outs.append(jax.lax.conv_general_dilated(
            x_nhwc, wg, window_strides=(1, 1), padding="VALID",
            dimension_numbers=("NHWC", "HWIO", "NHWC")))
    y = jnp.max(jnp.stack(outs, axis=0), axis=0)
    return jnp.maximum(y + b, 0.0)


def _ref_forward(x_nchw, params):
    x = jnp.transpose(x_nchw, (0, 2, 3, 1))
    h1 = _ref_gconv_c4(x, params["w1"], params["b1"])
    h2 = _ref_gconv_c4(h1, params["w2"], params["b2"])
    flat = h2.reshape(h2.shape[0], -1)
    return flat @ params["wf"] + params["bf"]


if __name__ == "__main__":
    # Input spatial must be 5x5 so two valid 3x3 convs reach 1x1 and flatten() yields
    # exactly 64 features for the Linear(64, num_classes) head, as in the reference model.
    batch, c_in, spatial, num_classes = 2, 4, 5, 3

    key = jax.random.PRNGKey(0)
    kx, kp = jax.random.split(key)
    x = jax.random.normal(kx, (batch, c_in, spatial, spatial), jnp.float32)  # NCHW
    params = init_params(kp, c_in, num_classes)

    logits = gequivariant_nn_forward(x, params)
    jax.block_until_ready(logits)

    assert logits.shape == (batch, num_classes), logits.shape
    assert logits.dtype == jnp.float32

    # Loose tolerance: kernel uses bf16 matmul operands with f32 accumulation.
    ref = _ref_forward(x, params)
    max_err = float(jnp.max(jnp.abs(logits - ref)))
    assert max_err < 1e-1, f"max abs err vs f32 reference: {max_err}"

    print("KERNEL_OK")
</pallas_src>

<mosaic_0001>
module attributes {stable_mosaic.version = 11 : i64} {
  func.func @fused_forward_kernel(%arg0: i32, %arg1: memref<8x100xf32, #tpu.memory_space<vmem>>, %arg2: memref<100x1536xbf16, #tpu.memory_space<vmem>>, %arg3: memref<1x384xf32, #tpu.memory_space<vmem>>, %arg4: memref<384x512xbf16, #tpu.memory_space<vmem>>, %arg5: memref<1x128xf32, #tpu.memory_space<vmem>>, %arg6: memref<128x128xbf16, #tpu.memory_space<vmem>>, %arg7: memref<1x128xf32, #tpu.memory_space<vmem>>, %arg8: memref<8x3xf32, #tpu.memory_space<vmem>>) attributes {dimension_semantics = [#tpu.dimension_semantics<parallel>], iteration_bounds = array<i64: 1>, scalar_prefetch = 0 : i64, scratch_operands = 0 : i64, tpu.core_type = #tpu.core_type<tc>, window_params = [{transform_indices = @transform_0, window_bounds = array<i64: 8, 100>}, {pipeline_mode = #tpu.pipeline_mode<synchronous>, transform_indices = @transform_1, window_bounds = array<i64: 100, 1536>}, {pipeline_mode = #tpu.pipeline_mode<synchronous>, transform_indices = @transform_2, window_bounds = array<i64: 1, 384>}, {pipeline_mode = #tpu.pipeline_mode<synchronous>, transform_indices = @transform_3, window_bounds = array<i64: 384, 512>}, {pipeline_mode = #tpu.pipeline_mode<synchronous>, transform_indices = @transform_4, window_bounds = array<i64: 1, 128>}, {pipeline_mode = #tpu.pipeline_mode<synchronous>, transform_indices = @transform_5, window_bounds = array<i64: 128, 128>}, {pipeline_mode = #tpu.pipeline_mode<synchronous>, transform_indices = @transform_6, window_bounds = array<i64: 1, 128>}, {transform_indices = @transform_7, window_bounds = array<i64: 8, 3>}]} {
    %c0 = arith.constant 0 : index
    %c0_0 = arith.constant 0 : index
    %0 = vector.load %arg1[%c0, %c0_0] : memref<8x100xf32, #tpu.memory_space<vmem>>, vector<8x100xf32>
    %1 = arith.truncf %0 : vector<8x100xf32> to vector<8x100xbf16>
    %c0_1 = arith.constant 0 : index
    %c0_2 = arith.constant 0 : index
    %2 = vector.load %arg2[%c0_1, %c0_2] : memref<100x1536xbf16, #tpu.memory_space<vmem>>, vector<100x1536xbf16>
    %cst = arith.constant dense<0.000000e+00> : vector<8x1536xf32>
    %3 = tpu.matmul %1, %2, %cst {dimension_numbers = #tpu.dot_dimension_numbers<[1], [0], [0], [1], [0, 0, 1, 1], [], []>} : vector<8x100xbf16>, vector<100x1536xbf16>, vector<8x1536xf32> -> vector<8x1536xf32>
    %4 = vector.extract_strided_slice %3 {offsets = [0, 0], sizes = [8, 384], strides = [1, 1]} : vector<8x1536xf32> to vector<8x384xf32>
    %5 = vector.extract_strided_slice %3 {offsets = [0, 384], sizes = [8, 384], strides = [1, 1]} : vector<8x1536xf32> to vector<8x384xf32>
    %6 = arith.maximumf %4, %5 : vector<8x384xf32>
    %7 = vector.extract_strided_slice %3 {offsets = [0, 768], sizes = [8, 384], strides = [1, 1]} : vector<8x1536xf32> to vector<8x384xf32>
    %8 = arith.maximumf %6, %7 : vector<8x384xf32>
    %9 = vector.extract_strided_slice %3 {offsets = [0, 1152], sizes = [8, 384], strides = [1, 1]} : vector<8x1536xf32> to vector<8x384xf32>
    %10 = arith.maximumf %8, %9 : vector<8x384xf32>
    %c0_3 = arith.constant 0 : index
    %c0_4 = arith.constant 0 : index
    %11 = vector.load %arg3[%c0_3, %c0_4] : memref<1x384xf32, #tpu.memory_space<vmem>>, vector<1x384xf32>
    %12 = vector.broadcast %11 : vector<1x384xf32> to vector<8x384xf32>
    %13 = arith.addf %10, %12 : vector<8x384xf32>
    %cst_5 = arith.constant 0.000000e+00 : f32
    %14 = vector.broadcast %cst_5 : f32 to vector<8x384xf32>
    %15 = arith.maximumf %13, %14 : vector<8x384xf32>
    %16 = arith.truncf %15 : vector<8x384xf32> to vector<8x384xbf16>
    %c0_6 = arith.constant 0 : index
    %c0_7 = arith.constant 0 : index
    %17 = vector.load %arg4[%c0_6, %c0_7] : memref<384x512xbf16, #tpu.memory_space<vmem>>, vector<384x512xbf16>
    %cst_8 = arith.constant dense<0.000000e+00> : vector<8x512xf32>
    %18 = tpu.matmul %16, %17, %cst_8 {dimension_numbers = #tpu.dot_dimension_numbers<[1], [0], [0], [1], [0, 0, 1, 1], [], []>} : vector<8x384xbf16>, vector<384x512xbf16>, vector<8x512xf32> -> vector<8x512xf32>
    %19 = vector.extract_strided_slice %18 {offsets = [0, 0], sizes = [8, 128], strides = [1, 1]} : vector<8x512xf32> to vector<8x128xf32>
    %20 = vector.extract_strided_slice %18 {offsets = [0, 128], sizes = [8, 128], strides = [1, 1]} : vector<8x512xf32> to vector<8x128xf32>
    %21 = arith.maximumf %19, %20 : vector<8x128xf32>
    %22 = vector.extract_strided_slice %18 {offsets = [0, 256], sizes = [8, 128], strides = [1, 1]} : vector<8x512xf32> to vector<8x128xf32>
    %23 = arith.maximumf %21, %22 : vector<8x128xf32>
    %24 = vector.extract_strided_slice %18 {offsets = [0, 384], sizes = [8, 128], strides = [1, 1]} : vector<8x512xf32> to vector<8x128xf32>
    %25 = arith.maximumf %23, %24 : vector<8x128xf32>
    %c0_9 = arith.constant 0 : index
    %c0_10 = arith.constant 0 : index
    %26 = vector.load %arg5[%c0_9, %c0_10] : memref<1x128xf32, #tpu.memory_space<vmem>>, vector<1x128xf32>
    %27 = vector.broadcast %26 : vector<1x128xf32> to vector<8x128xf32>
    %28 = arith.addf %25, %27 : vector<8x128xf32>
    %cst_11 = arith.constant 0.000000e+00 : f32
    %29 = vector.broadcast %cst_11 : f32 to vector<8x128xf32>
    %30 = arith.maximumf %28, %29 : vector<8x128xf32>
    %31 = arith.truncf %30 : vector<8x128xf32> to vector<8x128xbf16>
    %c0_12 = arith.constant 0 : index
    %c0_13 = arith.constant 0 : index
    %32 = vector.load %arg6[%c0_12, %c0_13] : memref<128x128xbf16, #tpu.memory_space<vmem>>, vector<128x128xbf16>
    %cst_14 = arith.constant dense<0.000000e+00> : vector<8x128xf32>
    %33 = tpu.matmul %31, %32, %cst_14 {dimension_numbers = #tpu.dot_dimension_numbers<[1], [0], [0], [1], [0, 0, 1, 1], [], []>} : vector<8x128xbf16>, vector<128x128xbf16>, vector<8x128xf32> -> vector<8x128xf32>
    %c0_15 = arith.constant 0 : index
    %c0_16 = arith.constant 0 : index
    %34 = vector.load %arg7[%c0_15, %c0_16] : memref<1x128xf32, #tpu.memory_space<vmem>>, vector<1x128xf32>
    %35 = vector.broadcast %34 : vector<1x128xf32> to vector<8x128xf32>
    %36 = arith.addf %33, %35 : vector<8x128xf32>
    %37 = vector.extract_strided_slice %36 {offsets = [0, 0], sizes = [8, 3], strides = [1, 1]} : vector<8x128xf32> to vector<8x3xf32>
    %c0_17 = arith.constant 0 : index
    %c0_18 = arith.constant 0 : index
    %38 = vector.load %arg8[%c0_17, %c0_18] : memref<8x3xf32, #tpu.memory_space<vmem>>, vector<8x3xf32>
    tpu.vector_store %arg8[%c0_17, %c0_18], %37 {strides = array<i32>} : memref<8x3xf32, #tpu.memory_space<vmem>>, vector<8x3xf32>,
    return
  }
  func.func @transform_0(%arg0: i32) -> (i32, i32) {
    %c0_i32 = arith.constant 0 : i32
    %c0_i32_0 = arith.constant 0 : i32
    return %arg0, %c0_i32 : i32, i32
  }
  func.func @transform_1(%arg0: i32) -> (i32, i32) {
    %c0_i32 = arith.constant 0 : i32
    %c0_i32_0 = arith.constant 0 : i32
    %c0_i32_1 = arith.constant 0 : i32
    return %c0_i32, %c0_i32_0 : i32, i32
  }
  func.func @transform_2(%arg0: i32) -> (i32, i32) {
    %c0_i32 = arith.constant 0 : i32
    %c0_i32_0 = arith.constant 0 : i32
    %c0_i32_1 = arith.constant 0 : i32
    return %c0_i32, %c0_i32_0 : i32, i32
  }
  func.func @transform_3(%arg0: i32) -> (i32, i32) {
    %c0_i32 = arith.constant 0 : i32
    %c0_i32_0 = arith.constant 0 : i32
    %c0_i32_1 = arith.constant 0 : i32
    return %c0_i32, %c0_i32_0 : i32, i32
  }
  func.func @transform_4(%arg0: i32) -> (i32, i32) {
    %c0_i32 = arith.constant 0 : i32
    %c0_i32_0 = arith.constant 0 : i32
    %c0_i32_1 = arith.constant 0 : i32
    return %c0_i32, %c0_i32_0 : i32, i32
  }
  func.func @transform_5(%arg0: i32) -> (i32, i32) {
    %c0_i32 = arith.constant 0 : i32
    %c0_i32_0 = arith.constant 0 : i32
    %c0_i32_1 = arith.constant 0 : i32
    return %c0_i32, %c0_i32_0 : i32, i32
  }
  func.func @transform_6(%arg0: i32) -> (i32, i32) {
    %c0_i32 = arith.constant 0 : i32
    %c0_i32_0 = arith.constant 0 : i32
    %c0_i32_1 = arith.constant 0 : i32
    return %c0_i32, %c0_i32_0 : i32, i32
  }
  func.func @transform_7(%arg0: i32) -> (i32, i32) {
    %c0_i32 = arith.constant 0 : i32
    %c0_i32_0 = arith.constant 0 : i32
    return %arg0, %c0_i32 : i32, i32
  }
}

</mosaic_0001>

<llo_original>
// kernel: tile.8
$region0: #{tile.8}
  #allocation0 [shape = 's32[1]{0}', space=sflag, size = 0x4, scoped, tag = 'scoped memory for tile.8']
  %s0 = inlined_call_operand.vmem [shape: f32[32], index: 0, kind: input, shape index: {}]
  %s1 = inlined_call_operand.vmem [shape: f32[9,32], index: 1, kind: output, shape index: {}]
  // Predicated region
  $region2: #{tile.8} parent=0 // pred_check
    _
  $region3: #{tile.8} parent=0 // pred_check_branch
    %3 = sbr.rel (0) target = $region5
  $region4: #{tile.8} parent=0 // pred_region
    _
  $region5: #{tile.8} parent=0 // pred_fallthru
    _
  %v4 = vld [vmem:[%s0] ss:$0 sm:$0xff]
  %5 = vst [vmem:[%s1] sm:$0xff] %v4
  %s6 = scalar_lea.vmem %s1, 8
  %7 = vst [vmem:[%s6] sm:$0xff] %v4

// kernel: tile.9
$region0: #{tile.9}
  %s0 = inlined_call_operand.vmem [shape: f32[9,32], index: 0, kind: input, shape index: {}]
  %s1 = inlined_call_operand.vmem [shape: f32[288], index: 1, kind: output, shape index: {}]
  $region1: #{tile.9} parent=0
    #allocation0 [shape = 'u8[4096]{0}', space=vmem, size = 0x1000, scoped, tag = 'scoped mem for output reshape']
    %v2 = vld [vmem:[%s0] ss:$4 sm:$0x7]
    %vm3 = vcmask 261120
    %4 = vst.msk [vmem:[#allocation0] sm:$0x7] %vm3, %v2
    %s5 = scalar_lea.vmem %s0, 3
    %s6 = smov 3
    %v7 = vld [vmem:[%s5] ss:$4 sm:%s6]
    %8 = vrot.lane.b32.xlu0 %v7, 96
    %v9 = vpop.permute.xlu0 %8
    %vm10 = vcmask 1048320
    %11 = vst.msk [vmem:[#allocation0] sm:$0x3] %vm10, %v9
    %s12 = scalar_lea.vmem %s0, 2
    %s13 = smov 3
    %v14 = vld [vmem:[%s12] ss:$4 sm:%s13]
    %15 = vrot.lane.b32.xlu0 %v14, 64
    %v16 = vpop.permute.xlu0 %15
    %vm17 = vcmask 785920
    %18 = vst.msk [vmem:[#allocation0] sm:$0x3] %vm17, %v16
    %s19 = scalar_lea.vmem %s0, 1
    %s20 = smov 3
    %v21 = vld [vmem:[%s19] ss:$4 sm:%s20]
    %22 = vrot.lane.b32.xlu0 %v21, 32
    %v23 = vpop.permute.xlu0 %22
    %vm24 = vcmask 523520
    %25 = vst.msk [vmem:[#allocation0] sm:$0x3] %vm24, %v23
    %s27 = sshll.u32 1, 4
    %s28 = ssub.s32 %s27, 1
    %v30 = vld [vmem:[#allocation0] sm:%s28]
    %s31 = sshll.u32 1, 4
    %s32 = ssub.s32 %s31, 1
    %33 = vst [vmem:[%s1] sm:%s32] %v30

// kernel: gequivariant_nn_forward.1
$region0: #{gequivariant_nn_forward.1}
  #allocation0 [shape = 'u32[]', space=smem, size = 0x4, offset = 0x4, fixed_abs, tag = 'smem constant byte address 0x4 - core index']
  #allocation1 [shape = 'u32[144,128]{1,0:T(1,128)}', space=vmem, size = 0x12000, scoped, tag = 'internal scratch']
  %s0 = inlined_call_operand.vmem [shape: f32[8,100], index: 0, kind: input, shape index: {}]
  %s1 = inlined_call_operand.vmem [shape: bf16[100,1536], index: 1, kind: input, shape index: {}]
  %s2 = inlined_call_operand.vmem [shape: f32[1,384], index: 2, kind: input, shape index: {}]
  %s3 = inlined_call_operand.vmem [shape: bf16[384,512], index: 3, kind: input, shape index: {}]
  %s4 = inlined_call_operand.vmem [shape: f32[1,128], index: 4, kind: input, shape index: {}]
  %s5 = inlined_call_operand.vmem [shape: bf16[128,128], index: 5, kind: input, shape index: {}]
  %s6 = inlined_call_operand.vmem [shape: f32[1,128], index: 6, kind: input, shape index: {}]
  %s7 = inlined_call_operand.vmem [shape: f32[8,3], index: 7, kind: output, shape index: {}]
  %s8 = sld [smem:[#allocation0]]
  $region38: #{gequivariant_nn_forward.1} parent=0
    _
  %s10 = ssub.s32 1, %s8
  %s11 = scalar_select 0, %s10, %s8
  // Predicated region
  $region2: #{gequivariant_nn_forward.1} parent=0 // pred_check
    _
  $region3: #{gequivariant_nn_forward.1} parent=0 // pred_check_branch
    %13 = sbr.rel (0) target = $region5
  $region4: #{gequivariant_nn_forward.1} parent=0 // pred_region
    _
  $region5: #{gequivariant_nn_forward.1} parent=0 // pred_fallthru
    _
  // Predicated region
  $region6: #{gequivariant_nn_forward.1} parent=0 // pred_check
    _
  $region7: #{gequivariant_nn_forward.1} parent=0 // pred_check_branch
    %15 = sbr.rel (0) target = $region9
  $region8: #{gequivariant_nn_forward.1} parent=0 // pred_region
    _
  $region9: #{gequivariant_nn_forward.1} parent=0 // pred_fallthru
    _
  // Predicated region
  $region10: #{gequivariant_nn_forward.1} parent=0 // pred_check
    _
  $region11: #{gequivariant_nn_forward.1} parent=0 // pred_check_branch
    %17 = sbr.rel (0) target = $region13
  $region12: #{gequivariant_nn_forward.1} parent=0 // pred_region
    _
  $region13: #{gequivariant_nn_forward.1} parent=0 // pred_fallthru
    _
  // Predicated region
  $region14: #{gequivariant_nn_forward.1} parent=0 // pred_check
    _
  $region15: #{gequivariant_nn_forward.1} parent=0 // pred_check_branch
    %19 = sbr.rel (0) target = $region17
  $region16: #{gequivariant_nn_forward.1} parent=0 // pred_region
    _
  $region17: #{gequivariant_nn_forward.1} parent=0 // pred_fallthru
    _
  // Predicated region
  $region18: #{gequivariant_nn_forward.1} parent=0 // pred_check
    _
  $region19: #{gequivariant_nn_forward.1} parent=0 // pred_check_branch
    %21 = sbr.rel (0) target = $region21
  $region20: #{gequivariant_nn_forward.1} parent=0 // pred_region
    _
  $region21: #{gequivariant_nn_forward.1} parent=0 // pred_fallthru
    _
  // Predicated region
  $region22: #{gequivariant_nn_forward.1} parent=0 // pred_check
    _
  $region23: #{gequivariant_nn_forward.1} parent=0 // pred_check_branch
    %23 = sbr.rel (0) target = $region25
  $region24: #{gequivariant_nn_forward.1} parent=0 // pred_region
    _
  $region25: #{gequivariant_nn_forward.1} parent=0 // pred_fallthru
    _
  // Predicated region
  $region26: #{gequivariant_nn_forward.1} parent=0 // pred_check
    _
  $region27: #{gequivariant_nn_forward.1} parent=0 // pred_check_branch
    %25 = sbr.rel (0) target = $region29
  $region28: #{gequivariant_nn_forward.1} parent=0 // pred_region
    _
  $region29: #{gequivariant_nn_forward.1} parent=0 // pred_fallthru
    _
  %v27 = vld [vmem:[%s0] sm:$0xff]
  %v28 = vpack.c.bf16 %v27, %v27
  %v29 = vld [vmem:[%s1] sm:$0xff]
  %v30 = vld [vmem:[%s1 + $0x8] sm:$0xff]
  %v31 = vld [vmem:[%s1 + $0x10] sm:$0xff]
  %v32 = vld [vmem:[%s1 + $0x18] sm:$0xff]
  %v33 = vld [vmem:[%s1 + $0x20] sm:$0xff]
  %v34 = vld [vmem:[%s1 + $0x28] sm:$0xff]
  %v35 = vld [vmem:[%s1 + $0x30] sm:$0xff]
  %v36 = vld [vmem:[%s1 + $0x38] sm:$0xff]
  %v37 = vld [vmem:[%s1 + $0x40] sm:$0xff]
  %v38 = vld [vmem:[%s1 + $0x48] sm:$0xff]
  %v39 = vld [vmem:[%s1 + $0x50] sm:$0xff]
  %v40 = vld [vmem:[%s1 + $0x58] sm:$0xff]
  %v41 = vld [vmem:[%s1 + $0x60] sm:$0xff]
  %v42 = vld [vmem:[%s1 + $0x68] sm:$0xff]
  %v43 = vld [vmem:[%s1 + $0x70] sm:$0xff]
  %v44 = vld [vmem:[%s1 + $0x78] sm:$0xff]
  %v45 = vld [vmem:[%s1 + $0x80] sm:$0xff]
  %v46 = vld [vmem:[%s1 + $0x88] sm:$0xff]
  %v47 = vld [vmem:[%s1 + $0x90] sm:$0xff]
  %v48 = vld [vmem:[%s1 + $0x98] sm:$0xff]
  %v49 = vld [vmem:[%s1 + $0xa0] sm:$0xff]
  %v50 = vld [vmem:[%s1 + $0xa8] sm:$0xff]
  %v51 = vld [vmem:[%s1 + $0xb0] sm:$0xff]
  %v52 = vld [vmem:[%s1 + $0xb8] sm:$0xff]
  %v53 = vld [vmem:[%s1 + $0xc0] sm:$0xff]
  %v54 = vld [vmem:[%s1 + $0xc8] sm:$0xff]
  %v55 = vld [vmem:[%s1 + $0xd0] sm:$0xff]
  %v56 = vld [vmem:[%s1 + $0xd8] sm:$0xff]
  %v57 = vld [vmem:[%s1 + $0xe0] sm:$0xff]
  %v58 = vld [vmem:[%s1 + $0xe8] sm:$0xff]
  %v59 = vld [vmem:[%s1 + $0xf0] sm:$0xff]
  %v60 = vld [vmem:[%s1 + $0xf8] sm:$0xff]
  %v61 = vld [vmem:[%s1 + $0x100] sm:$0xff]
  %v62 = vld [vmem:[%s1 + $0x108] sm:$0xff]
  %v63 = vld [vmem:[%s1 + $0x110] sm:$0xff]
  %v64 = vld [vmem:[%s1 + $0x118] sm:$0xff]
  %v65 = vld [vmem:[%s1 + $0x120] sm:$0xff]
  %v66 = vld [vmem:[%s1 + $0x128] sm:$0xff]
  %v67 = vld [vmem:[%s1 + $0x130] sm:$0xff]
  %v68 = vld [vmem:[%s1 + $0x138] sm:$0xff]
  %v69 = vld [vmem:[%s1 + $0x140] sm:$0xff]
  %v70 = vld [vmem:[%s1 + $0x148] sm:$0xff]
  %v71 = vld [vmem:[%s1 + $0x150] sm:$0xff]
  %v72 = vld [vmem:[%s1 + $0x158] sm:$0xff]
  %v73 = vld [vmem:[%s1 + $0x160] sm:$0xff]
  %v74 = vld [vmem:[%s1 + $0x168] sm:$0xff]
  %v75 = vld [vmem:[%s1 + $0x170] sm:$0xff]
  %v76 = vld [vmem:[%s1 + $0x178] sm:$0xff]
  %v77 = vld [vmem:[%s1 + $0x180] sm:$0xff]
  %v78 = vld [vmem:[%s1 + $0x188] sm:$0xff]
  %v79 = vld [vmem:[%s1 + $0x190] sm:$0xff]
  %v80 = vld [vmem:[%s1 + $0x198] sm:$0xff]
  %v81 = vld [vmem:[%s1 + $0x1a0] sm:$0xff]
  %v82 = vld [vmem:[%s1 + $0x1a8] sm:$0xff]
  %v83 = vld [vmem:[%s1 + $0x1b0] sm:$0xff]
  %v84 = vld [vmem:[%s1 + $0x1b8] sm:$0xff]
  %v85 = vld [vmem:[%s1 + $0x1c0] sm:$0xff]
  %v86 = vld [vmem:[%s1 + $0x1c8] sm:$0xff]
  %v87 = vld [vmem:[%s1 + $0x1d0] sm:$0xff]
  %v88 = vld [vmem:[%s1 + $0x1d8] sm:$0xff]
  %v89 = vld [vmem:[%s1 + $0x1e0] sm:$0xff]
  %v90 = vld [vmem:[%s1 + $0x1e8] sm:$0xff]
  %v91 = vld [vmem:[%s1 + $0x1f0] sm:$0xff]
  %v92 = vld [vmem:[%s1 + $0x1f8] sm:$0xff]
  %v93 = vld [vmem:[%s1 + $0x200] sm:$0xff]
  %v94 = vld [vmem:[%s1 + $0x208] sm:$0xff]
  %v95 = vld [vmem:[%s1 + $0x210] sm:$0xff]
  %v96 = vld [vmem:[%s1 + $0x218] sm:$0xff]
  %v97 = vld [vmem:[%s1 + $0x220] sm:$0xff]
  %v98 = vld [vmem:[%s1 + $0x228] sm:$0xff]
  %v99 = vld [vmem:[%s1 + $0x230] sm:$0xff]
  %v100 = vld [vmem:[%s1 + $0x238] sm:$0xff]
  %v101 = vld [vmem:[%s1 + $0x240] sm:$0x33]
  %v102 = vld [vmem:[%s1 + $0x248] sm:$0x33]
  %v103 = vld [vmem:[%s1 + $0x250] sm:$0x33]
  %v104 = vld [vmem:[%s1 + $0x258] sm:$0x33]
  %v105 = vld [vmem:[%s1 + $0x260] sm:$0x33]
  %v106 = vld [vmem:[%s1 + $0x268] sm:$0x33]
  %v185 = vunpack.c.l.b16 %v29
  %v186 = vunpack.c.h.b16 %v29
  %v187 = vunpack.c.l.b16 %v30
  %v188 = vunpack.c.h.b16 %v30
  %v189 = vunpack.c.l.b16 %v31
  %v190 = vunpack.c.h.b16 %v31
  %v191 = vunpack.c.l.b16 %v32
  %v192 = vunpack.c.h.b16 %v32
  %v193 = vunpack.c.l.b16 %v33
  %v194 = vunpack.c.h.b16 %v33
  %v195 = vunpack.c.l.b16 %v34
  %v196 = vunpack.c.h.b16 %v34
  %v197 = vunpack.c.l.b16 %v35
  %v198 = vunpack.c.h.b16 %v35
  %v199 = vunpack.c.l.b16 %v36
  %v200 = vunpack.c.h.b16 %v36
  %v201 = vunpack.c.l.b16 %v37
  %v202 = vunpack.c.h.b16 %v37
  %v203 = vunpack.c.l.b16 %v38
  %v204 = vunpack.c.h.b16 %v38
  %v205 = vunpack.c.l.b16 %v39
  %v206 = vunpack.c.h.b16 %v39
  %v207 = vunpack.c.l.b16 %v40
  %v208 = vunpack.c.h.b16 %v40
  %v209 = vunpack.c.l.b16 %v41
  %v210 = vunpack.c.h.b16 %v41
  %v211 = vunpack.c.l.b16 %v42
  %v212 = vunpack.c.h.b16 %v42
  %v213 = vunpack.c.l.b16 %v43
  %v214 = vunpack.c.h.b16 %v43
  %v215 = vunpack.c.l.b16 %v44
  %v216 = vunpack.c.h.b16 %v44
  %v217 = vunpack.c.l.b16 %v45
  %v218 = vunpack.c.h.b16 %v45
  %v219 = vunpack.c.l.b16 %v46
  %v220 = vunpack.c.h.b16 %v46
  %v221 = vunpack.c.l.b16 %v47
  %v222 = vunpack.c.h.b16 %v47
  %v223 = vunpack.c.l.b16 %v48
  %v224 = vunpack.c.h.b16 %v48
  %v225 = vunpack.c.l.b16 %v49
  %v226 = vunpack.c.h.b16 %v49
  %v227 = vunpack.c.l.b16 %v50
  %v228 = vunpack.c.h.b16 %v50
  %v229 = vunpack.c.l.b16 %v51
  %v230 = vunpack.c.h.b16 %v51
  %v231 = vunpack.c.l.b16 %v52
  %v232 = vunpack.c.h.b16 %v52
  %v233 = vunpack.c.l.b16 %v53
  %v234 = vunpack.c.h.b16 %v53
  %v235 = vunpack.c.l.b16 %v54
  %v236 = vunpack.c.h.b16 %v54
  %v237 = vunpack.c.l.b16 %v55
  %v238 = vunpack.c.h.b16 %v55
  %v239 = vunpack.c.l.b16 %v56
  %v240 = vunpack.c.h.b16 %v56
  %v241 = vunpack.c.l.b16 %v57
  %v242 = vunpack.c.h.b16 %v57
  %v243 = vunpack.c.l.b16 %v58
  %v244 = vunpack.c.h.b16 %v58
  %v245 = vunpack.c.l.b16 %v59
  %v246 = vunpack.c.h.b16 %v59
  %v247 = vunpack.c.l.b16 %v60
  %v248 = vunpack.c.h.b16 %v60
  %v249 = vunpack.c.l.b16 %v61
  %v250 = vunpack.c.h.b16 %v61
  %v251 = vunpack.c.l.b16 %v62
  %v252 = vunpack.c.h.b16 %v62
  %v253 = vunpack.c.l.b16 %v63
  %v254 = vunpack.c.h.b16 %v63
  %v255 = vunpack.c.l.b16 %v64
  %v256 = vunpack.c.h.b16 %v64
  %v257 = vunpack.c.l.b16 %v65
  %v258 = vunpack.c.h.b16 %v65
  %v259 = vunpack.c.l.b16 %v66
  %v260 = vunpack.c.h.b16 %v66
  %v261 = vunpack.c.l.b16 %v67
  %v262 = vunpack.c.h.b16 %v67
  %v263 = vunpack.c.l.b16 %v68
  %v264 = vunpack.c.h.b16 %v68
  %v265 = vunpack.c.l.b16 %v69
  %v266 = vunpack.c.h.b16 %v69
  %v267 = vunpack.c.l.b16 %v70
  %v268 = vunpack.c.h.b16 %v70
  %v269 = vunpack.c.l.b16 %v71
  %v270 = vunpack.c.h.b16 %v71
  %v271 = vunpack.c.l.b16 %v72
  %v272 = vunpack.c.h.b16 %v72
  %v273 = vunpack.c.l.b16 %v73
  %v274 = vunpack.c.h.b16 %v73
  %v275 = vunpack.c.l.b16 %v74
  %v276 = vunpack.c.h.b16 %v74
  %v277 = vunpack.c.l.b16 %v75
  %v278 = vunpack.c.h.b16 %v75
  %v279 = vunpack.c.l.b16 %v76
  %v280 = vunpack.c.h.b16 %v76
  %v281 = vunpack.c.l.b16 %v77
  %v282 = vunpack.c.h.b16 %v77
  %v283 = vunpack.c.l.b16 %v78
  %v284 = vunpack.c.h.b16 %v78
  %v285 = vunpack.c.l.b16 %v79
  %v286 = vunpack.c.h.b16 %v79
  %v287 = vunpack.c.l.b16 %v80
  %v288 = vunpack.c.h.b16 %v80
  %v289 = vunpack.c.l.b16 %v81
  %v290 = vunpack.c.h.b16 %v81
  %v291 = vunpack.c.l.b16 %v82
  %v292 = vunpack.c.h.b16 %v82
  %v293 = vunpack.c.l.b16 %v83
  %v294 = vunpack.c.h.b16 %v83
  %v295 = vunpack.c.l.b16 %v84
  %v296 = vunpack.c.h.b16 %v84
  %v297 = vunpack.c.l.b16 %v85
  %v298 = vunpack.c.h.b16 %v85
  %v299 = vunpack.c.l.b16 %v86
  %v300 = vunpack.c.h.b16 %v86
  %v301 = vunpack.c.l.b16 %v87
  %v302 = vunpack.c.h.b16 %v87
  %v303 = vunpack.c.l.b16 %v88
  %v304 = vunpack.c.h.b16 %v88
  %v305 = vunpack.c.l.b16 %v89
  %v306 = vunpack.c.h.b16 %v89
  %v307 = vunpack.c.l.b16 %v90
  %v308 = vunpack.c.h.b16 %v90
  %v309 = vunpack.c.l.b16 %v91
  %v310 = vunpack.c.h.b16 %v91
  %v311 = vunpack.c.l.b16 %v92
  %v312 = vunpack.c.h.b16 %v92
  %v313 = vunpack.c.l.b16 %v93
  %v314 = vunpack.c.h.b16 %v93
  %v315 = vunpack.c.l.b16 %v94
  %v316 = vunpack.c.h.b16 %v94
  %v317 = vunpack.c.l.b16 %v95
  %v318 = vunpack.c.h.b16 %v95
  %v319 = vunpack.c.l.b16 %v96
  %v320 = vunpack.c.h.b16 %v96
  %v321 = vunpack.c.l.b16 %v97
  %v322 = vunpack.c.h.b16 %v97
  %v323 = vunpack.c.l.b16 %v98
  %v324 = vunpack.c.h.b16 %v98
  %v325 = vunpack.c.l.b16 %v99
  %v326 = vunpack.c.h.b16 %v99
  %v327 = vunpack.c.l.b16 %v100
  %v328 = vunpack.c.h.b16 %v100
  %v329 = vunpack.c.l.b16 %v101
  %v330 = vunpack.c.h.b16 %v101
  %v331 = vunpack.c.l.b16 %v102
  %v332 = vunpack.c.h.b16 %v102
  %v333 = vunpack.c.l.b16 %v103
  %v334 = vunpack.c.h.b16 %v103
  %v335 = vunpack.c.l.b16 %v104
  %v336 = vunpack.c.h.b16 %v104
  %v337 = vunpack.c.l.b16 %v105
  %v338 = vunpack.c.h.b16 %v105
  %v339 = vunpack.c.l.b16 %v106
  %v340 = vunpack.c.h.b16 %v106
  %v341 = vpack.c.b16 %v197, %v185
  %v342 = vpack.c.b16 %v198, %v186
  %v343 = vpack.c.b16 %v199, %v187
  %v344 = vpack.c.b16 %v200, %v188
  %v345 = vpack.c.b16 %v201, %v189
  %v346 = vpack.c.b16 %v202, %v190
  %v347 = vpack.c.b16 %v203, %v191
  %v348 = vpack.c.b16 %v204, %v192
  %v349 = vpack.c.b16 %v205, %v193
  %v350 = vpack.c.b16 %v206, %v194
  %v351 = vpack.c.b16 %v207, %v195
  %v352 = vpack.c.b16 %v208, %v196
  %v353 = vpack.c.b16 %v221, %v209
  %v354 = vpack.c.b16 %v222, %v210
  %v355 = vpack.c.b16 %v223, %v211
  %v356 = vpack.c.b16 %v224, %v212
  %v357 = vpack.c.b16 %v225, %v213
  %v358 = vpack.c.b16 %v226, %v214
  %v359 = vpack.c.b16 %v227, %v215
  %v360 = vpack.c.b16 %v228, %v216
  %v361 = vpack.c.b16 %v229, %v217
  %v362 = vpack.c.b16 %v230, %v218
  %v363 = vpack.c.b16 %v231, %v219
  %v364 = vpack.c.b16 %v232, %v220
  %v365 = vpack.c.b16 %v245, %v233
  %v366 = vpack.c.b16 %v246, %v234
  %v367 = vpack.c.b16 %v247, %v235
  %v368 = vpack.c.b16 %v248, %v236
  %v369 = vpack.c.b16 %v249, %v237
  %v370 = vpack.c.b16 %v250, %v238
  %v371 = vpack.c.b16 %v251, %v239
  %v372 = vpack.c.b16 %v252, %v240
  %v373 = vpack.c.b16 %v253, %v241
  %v374 = vpack.c.b16 %v254, %v242
  %v375 = vpack.c.b16 %v255, %v243
  %v376 = vpack.c.b16 %v256, %v244
  %v377 = vpack.c.b16 %v269, %v257
  %v378 = vpack.c.b16 %v270, %v258
  %v379 = vpack.c.b16 %v271, %v259
  %v380 = vpack.c.b16 %v272, %v260
  %v381 = vpack.c.b16 %v273, %v261
  %v382 = vpack.c.b16 %v274, %v262
  %v383 = vpack.c.b16 %v275, %v263
  %v384 = vpack.c.b16 %v276, %v264
  %v385 = vpack.c.b16 %v277, %v265
  %v386 = vpack.c.b16 %v278, %v266
  %v387 = vpack.c.b16 %v279, %v267
  %v388 = vpack.c.b16 %v280, %v268
  %v389 = vpack.c.b16 %v293, %v281
  %v390 = vpack.c.b16 %v294, %v282
  %v391 = vpack.c.b16 %v295, %v283
  %v392 = vpack.c.b16 %v296, %v284
  %v393 = vpack.c.b16 %v297, %v285
  %v394 = vpack.c.b16 %v298, %v286
  %v395 = vpack.c.b16 %v299, %v287
  %v396 = vpack.c.b16 %v300, %v288
  %v397 = vpack.c.b16 %v301, %v289
  %v398 = vpack.c.b16 %v302, %v290
  %v399 = vpack.c.b16 %v303, %v291
  %v400 = vpack.c.b16 %v304, %v292
  %v401 = vpack.c.b16 %v317, %v305
  %v402 = vpack.c.b16 %v318, %v306
  %v403 = vpack.c.b16 %v319, %v307
  %v404 = vpack.c.b16 %v320, %v308
  %v405 = vpack.c.b16 %v321, %v309
  %v406 = vpack.c.b16 %v322, %v310
  %v407 = vpack.c.b16 %v323, %v311
  %v408 = vpack.c.b16 %v324, %v312
  %v409 = vpack.c.b16 %v325, %v313
  %v410 = vpack.c.b16 %v326, %v314
  %v411 = vpack.c.b16 %v327, %v315
  %v412 = vpack.c.b16 %v328, %v316
  %v413 = vpack.c.b16 %v329, %v329
  %v414 = vpack.c.b16 %v330, %v330
  %v415 = vpack.c.b16 %v331, %v331
  %v416 = vpack.c.b16 %v332, %v332
  %v417 = vpack.c.b16 %v333, %v333
  %v418 = vpack.c.b16 %v334, %v334
  %v419 = vpack.c.b16 %v335, %v335
  %v420 = vpack.c.b16 %v336, %v336
  %v421 = vpack.c.b16 %v337, %v337
  %v422 = vpack.c.b16 %v338, %v338
  %v423 = vpack.c.b16 %v339, %v339
  %v424 = vpack.c.b16 %v340, %v340
  %vm497 = vcmask 818176
  %v499 = vsel %vm497, %v28, 0
  %vm501 = vcmask 1041408
  %v503 = vsel %vm501, %v413, 0
  %v506 = vsel %vm501, %v414, 0
  %v509 = vsel %vm501, %v415, 0
  %v512 = vsel %vm501, %v416, 0
  %v515 = vsel %vm501, %v417, 0
  %v518 = vsel %vm501, %v418, 0
  %v521 = vsel %vm501, %v419, 0
  %v524 = vsel %vm501, %v420, 0
  %v527 = vsel %vm501, %v421, 0
  %v530 = vsel %vm501, %v422, 0
  %v533 = vsel %vm501, %v423, 0
  %v536 = vsel %vm501, %v424, 0
  %538 = vmatprep.subr.bf16.mxu0 0
  %539 = vmatpush1.bf16.msra.mxu0 0
  %540 = vmatprep.subr.bf16.mxu0 %v506
  %541 = vmatpush1.bf16.msra.mxu0 %v503
  %542 = vmatprep.subr.bf16.mxu0 %v402
  %543 = vmatpush1.bf16.msra.mxu0 %v401
  %544 = vmatprep.subr.bf16.mxu0 %v390
  %545 = vmatpush1.bf16.msra.mxu0 %v389
  %546 = vmatprep.subr.bf16.mxu0 %v378
  %547 = vmatpush1.bf16.msra.mxu0 %v377
  %548 = vmatprep.subr.bf16.mxu0 %v366
  %549 = vmatpush1.bf16.msra.mxu0 %v365
  %550 = vmatprep.subr.bf16.mxu0 %v354
  %551 = vmatpush1.bf16.msra.mxu0 %v353
  %552 = vmatprep.subr.bf16.mxu0 %v342
  %553 = vmatpush1.bf16.msra.mxu0 %v341
  %554 = vmatprep.subr.bf16.mxu0 0
  %555 = vmatpush2.bf16.msra.mxu0 0
  %556 = vmatprep.subr.bf16.mxu0 0
  %557 = vmatpush2.bf16.msra.mxu0 0
  %558 = vmatprep.subr.bf16.mxu0 0
  %559 = vmatpush2.bf16.msra.mxu0 0
  %560 = vmatprep.subr.bf16.mxu0 0
  %561 = vmatpush2.bf16.msra.mxu0 0
  %562 = vmatprep.subr.bf16.mxu0 0
  %563 = vmatpush2.bf16.msra.mxu0 0
  %564 = vmatprep.subr.bf16.mxu0 0
  %565 = vmatpush2.bf16.msra.mxu0 0
  %566 = vmatprep.subr.bf16.mxu0 0
  %567 = vmatpush2.bf16.msra.mxu0 0
  %568 = vmatprep.subr.bf16.mxu0 0
  %569 = vmatpush2.bf16.msra.mxu0 0
  %570 = vmatprep.mubr.bf16.mxu0 0
  %571 = vmatmul.mubr.bf16.gmra.mxu0 %v499
  %v572 = vpop.f32.mrf.mxu0
  %v573 = vadd.f32 0.0, %v572
  %v574 = vpop.f32.mrf.mxu0
  %v575 = vadd.f32 0.0, %v574
  %v576 = vpop.f32.mrf.mxu0
  %v577 = vpop.f32.mrf.mxu0
  %578 = vdwg.mxu0
  %579 = vmatprep.subr.bf16.mxu0 0
  %580 = vmatpush1.bf16.msra.mxu0 0
  %581 = vmatprep.subr.bf16.mxu0 %v512
  %582 = vmatpush1.bf16.msra.mxu0 %v509
  %583 = vmatprep.subr.bf16.mxu0 %v404
  %584 = vmatpush1.bf16.msra.mxu0 %v403
  %585 = vmatprep.subr.bf16.mxu0 %v392
  %586 = vmatpush1.bf16.msra.mxu0 %v391
  %587 = vmatprep.subr.bf16.mxu0 %v380
  %588 = vmatpush1.bf16.msra.mxu0 %v379
  %589 = vmatprep.subr.bf16.mxu0 %v368
  %590 = vmatpush1.bf16.msra.mxu0 %v367
  %591 = vmatprep.subr.bf16.mxu0 %v356
  %592 = vmatpush1.bf16.msra.mxu0 %v355
  %593 = vmatprep.subr.bf16.mxu0 %v344
  %594 = vmatpush1.bf16.msra.mxu0 %v343
  %595 = vmatprep.subr.bf16.mxu0 0
  %596 = vmatpush2.bf16.msra.mxu0 0
  %597 = vmatprep.subr.bf16.mxu0 0
  %598 = vmatpush2.bf16.msra.mxu0 0
  %599 = vmatprep.subr.bf16.mxu0 0
  %600 = vmatpush2.bf16.msra.mxu0 0
  %601 = vmatprep.subr.bf16.mxu0 0
  %602 = vmatpush2.bf16.msra.mxu0 0
  %603 = vmatprep.subr.bf16.mxu0 0
  %604 = vmatpush2.bf16.msra.mxu0 0
  %605 = vmatprep.subr.bf16.mxu0 0
  %606 = vmatpush2.bf16.msra.mxu0 0
  %607 = vmatprep.subr.bf16.mxu0 0
  %608 = vmatpush2.bf16.msra.mxu0 0
  %609 = vmatprep.subr.bf16.mxu0 0
  %610 = vmatpush2.bf16.msra.mxu0 0
  %611 = vmatprep.mubr.bf16.mxu0 0
  %612 = vmatmul.mubr.bf16.gmra.mxu0 %v499
  %v613 = vpop.f32.mrf.mxu0
  %v614 = vadd.f32 0.0, %v613
  %v615 = vpop.f32.mrf.mxu0
  %v616 = vadd.f32 0.0, %v615
  %v617 = vpop.f32.mrf.mxu0
  %v618 = vpop.f32.mrf.mxu0
  %619 = vdwg.mxu0
  %620 = vmatprep.subr.bf16.mxu0 0
  %621 = vmatpush1.bf16.msra.mxu0 0
  %622 = vmatprep.subr.bf16.mxu0 %v518
  %623 = vmatpush1.bf16.msra.mxu0 %v515
  %624 = vmatprep.subr.bf16.mxu0 %v406
  %625 = vmatpush1.bf16.msra.mxu0 %v405
  %626 = vmatprep.subr.bf16.mxu0 %v394
  %627 = vmatpush1.bf16.msra.mxu0 %v393
  %628 = vmatprep.subr.bf16.mxu0 %v382
  %629 = vmatpush1.bf16.msra.mxu0 %v381
  %630 = vmatprep.subr.bf16.mxu0 %v370
  %631 = vmatpush1.bf16.msra.mxu0 %v369
  %632 = vmatprep.subr.bf16.mxu0 %v358
  %633 = vmatpush1.bf16.msra.mxu0 %v357
  %634 = vmatprep.subr.bf16.mxu0 %v346
  %635 = vmatpush1.bf16.msra.mxu0 %v345
  %636 = vmatprep.subr.bf16.mxu0 0
  %637 = vmatpush2.bf16.msra.mxu0 0
  %638 = vmatprep.subr.bf16.mxu0 0
  %639 = vmatpush2.bf16.msra.mxu0 0
  %640 = vmatprep.subr.bf16.mxu0 0
  %641 = vmatpush2.bf16.msra.mxu0 0
  %642 = vmatprep.subr.bf16.mxu0 0
  %643 = vmatpush2.bf16.msra.mxu0 0
  %644 = vmatprep.subr.bf16.mxu0 0
  %645 = vmatpush2.bf16.msra.mxu0 0
  %646 = vmatprep.subr.bf16.mxu0 0
  %647 = vmatpush2.bf16.msra.mxu0 0
  %648 = vmatprep.subr.bf16.mxu0 0
  %649 = vmatpush2.bf16.msra.mxu0 0
  %650 = vmatprep.subr.bf16.mxu0 0
  %651 = vmatpush2.bf16.msra.mxu0 0
  %652 = vmatprep.mubr.bf16.mxu0 0
  %653 = vmatmul.mubr.bf16.gmra.mxu0 %v499
  %v654 = vpop.f32.mrf.mxu0
  %v655 = vadd.f32 0.0, %v654
  %v656 = vpop.f32.mrf.mxu0
  %v657 = vadd.f32 0.0, %v656
  %v658 = vpop.f32.mrf.mxu0
  %v659 = vpop.f32.mrf.mxu0
  %660 = vdwg.mxu0
  %661 = vmatprep.subr.bf16.mxu0 0
  %662 = vmatpush1.bf16.msra.mxu0 0
  %663 = vmatprep.subr.bf16.mxu0 %v524
  %664 = vmatpush1.bf16.msra.mxu0 %v521
  %665 = vmatprep.subr.bf16.mxu0 %v408
  %666 = vmatpush1.bf16.msra.mxu0 %v407
  %667 = vmatprep.subr.bf16.mxu0 %v396
  %668 = vmatpush1.bf16.msra.mxu0 %v395
  %669 = vmatprep.subr.bf16.mxu0 %v384
  %670 = vmatpush1.bf16.msra.mxu0 %v383
  %671 = vmatprep.subr.bf16.mxu0 %v372
  %672 = vmatpush1.bf16.msra.mxu0 %v371
  %673 = vmatprep.subr.bf16.mxu0 %v360
  %674 = vmatpush1.bf16.msra.mxu0 %v359
  %675 = vmatprep.subr.bf16.mxu0 %v348
  %676 = vmatpush1.bf16.msra.mxu0 %v347
  %677 = vmatprep.subr.bf16.mxu0 0
  %678 = vmatpush2.bf16.msra.mxu0 0
  %679 = vmatprep.subr.bf16.mxu0 0
  %680 = vmatpush2.bf16.msra.mxu0 0
  %681 = vmatprep.subr.bf16.mxu0 0
  %682 = vmatpush2.bf16.msra.mxu0 0
  %683 = vmatprep.subr.bf16.mxu0 0
  %684 = vmatpush2.bf16.msra.mxu0 0
  %685 = vmatprep.subr.bf16.mxu0 0
  %686 = vmatpush2.bf16.msra.mxu0 0
  %687 = vmatprep.subr.bf16.mxu0 0
  %688 = vmatpush2.bf16.msra.mxu0 0
  %689 = vmatprep.subr.bf16.mxu0 0
  %690 = vmatpush2.bf16.msra.mxu0 0
  %691 = vmatprep.subr.bf16.mxu0 0
  %692 = vmatpush2.bf16.msra.mxu0 0
  %693 = vmatprep.mubr.bf16.mxu0 0
  %694 = vmatmul.mubr.bf16.gmra.mxu0 %v499
  %v695 = vpop.f32.mrf.mxu0
  %v696 = vadd.f32 0.0, %v695
  %v697 = vpop.f32.mrf.mxu0
  %v698 = vadd.f32 0.0, %v697
  %v699 = vpop.f32.mrf.mxu0
  %v700 = vpop.f32.mrf.mxu0
  %701 = vdwg.mxu0
  %702 = vmatprep.subr.bf16.mxu0 0
  %703 = vmatpush1.bf16.msra.mxu0 0
  %704 = vmatprep.subr.bf16.mxu0 %v530
  %705 = vmatpush1.bf16.msra.mxu0 %v527
  %706 = vmatprep.subr.bf16.mxu0 %v410
  %707 = vmatpush1.bf16.msra.mxu0 %v409
  %708 = vmatprep.subr.bf16.mxu0 %v398
  %709 = vmatpush1.bf16.msra.mxu0 %v397
  %710 = vmatprep.subr.bf16.mxu0 %v386
  %711 = vmatpush1.bf16.msra.mxu0 %v385
  %712 = vmatprep.subr.bf16.mxu0 %v374
  %713 = vmatpush1.bf16.msra.mxu0 %v373
  %714 = vmatprep.subr.bf16.mxu0 %v362
  %715 = vmatpush1.bf16.msra.mxu0 %v361
  %716 = vmatprep.subr.bf16.mxu0 %v350
  %717 = vmatpush1.bf16.msra.mxu0 %v349
  %718 = vmatprep.subr.bf16.mxu0 0
  %719 = vmatpush2.bf16.msra.mxu0 0
  %720 = vmatprep.subr.bf16.mxu0 0
  %721 = vmatpush2.bf16.msra.mxu0 0
  %722 = vmatprep.subr.bf16.mxu0 0
  %723 = vmatpush2.bf16.msra.mxu0 0
  %724 = vmatprep.subr.bf16.mxu0 0
  %725 = vmatpush2.bf16.msra.mxu0 0
  %726 = vmatprep.subr.bf16.mxu0 0
  %727 = vmatpush2.bf16.msra.mxu0 0
  %728 = vmatprep.subr.bf16.mxu0 0
  %729 = vmatpush2.bf16.msra.mxu0 0
  %730 = vmatprep.subr.bf16.mxu0 0
  %731 = vmatpush2.bf16.msra.mxu0 0
  %732 = vmatprep.subr.bf16.mxu0 0
  %733 = vmatpush2.bf16.msra.mxu0 0
  %734 = vmatprep.mubr.bf16.mxu0 0
  %735 = vmatmul.mubr.bf16.gmra.mxu0 %v499
  %v736 = vpop.f32.mrf.mxu0
  %v737 = vadd.f32 0.0, %v736
  %v738 = vpop.f32.mrf.mxu0
  %v739 = vadd.f32 0.0, %v738
  %v740 = vpop.f32.mrf.mxu0
  %v741 = vpop.f32.mrf.mxu0
  %742 = vdwg.mxu0
  %743 = vmatprep.subr.bf16.mxu0 0
  %744 = vmatpush1.bf16.msra.mxu0 0
  %745 = vmatprep.subr.bf16.mxu0 %v536
  %746 = vmatpush1.bf16.msra.mxu0 %v533
  %747 = vmatprep.subr.bf16.mxu0 %v412
  %748 = vmatpush1.bf16.msra.mxu0 %v411
  %749 = vmatprep.subr.bf16.mxu0 %v400
  %750 = vmatpush1.bf16.msra.mxu0 %v399
  %751 = vmatprep.subr.bf16.mxu0 %v388
  %752 = vmatpush1.bf16.msra.mxu0 %v387
  %753 = vmatprep.subr.bf16.mxu0 %v376
  %754 = vmatpush1.bf16.msra.mxu0 %v375
  %755 = vmatprep.subr.bf16.mxu0 %v364
  %756 = vmatpush1.bf16.msra.mxu0 %v363
  %757 = vmatprep.subr.bf16.mxu0 %v352
  %758 = vmatpush1.bf16.msra.mxu0 %v351
  %759 = vmatprep.subr.bf16.mxu0 0
  %760 = vmatpush2.bf16.msra.mxu0 0
  %761 = vmatprep.subr.bf16.mxu0 0
  %762 = vmatpush2.bf16.msra.mxu0 0
  %763 = vmatprep.subr.bf16.mxu0 0
  %764 = vmatpush2.bf16.msra.mxu0 0
  %765 = vmatprep.subr.bf16.mxu0 0
  %766 = vmatpush2.bf16.msra.mxu0 0
  %767 = vmatprep.subr.bf16.mxu0 0
  %768 = vmatpush2.bf16.msra.mxu0 0
  %769 = vmatprep.subr.bf16.mxu0 0
  %770 = vmatpush2.bf16.msra.mxu0 0
  %771 = vmatprep.subr.bf16.mxu0 0
  %772 = vmatpush2.bf16.msra.mxu0 0
  %773 = vmatprep.subr.bf16.mxu0 0
  %774 = vmatpush2.bf16.msra.mxu0 0
  %775 = vmatprep.mubr.bf16.mxu0 0
  %776 = vmatmul.mubr.bf16.gmra.mxu0 %v499
  %v777 = vpop.f32.mrf.mxu0
  %v778 = vadd.f32 0.0, %v777
  %v779 = vpop.f32.mrf.mxu0
  %v780 = vadd.f32 0.0, %v779
  %v781 = vpop.f32.mrf.mxu0
  %v782 = vpop.f32.mrf.mxu0
  %783 = vdwg.mxu0
  %v784 = vmax.f32 %v573, %v616
  %v785 = vmax.f32 %v575, %v655
  %v786 = vmax.f32 %v614, %v657
  %v787 = vmax.f32 %v784, %v696
  %v788 = vmax.f32 %v785, %v698
  %v789 = vmax.f32 %v786, %v737
  %v790 = vmax.f32 %v787, %v739
  %v791 = vmax.f32 %v788, %v778
  %v792 = vmax.f32 %v789, %v780
  %v793 = vld [vmem:[%s2] sm:$0x7]
  %v795 = vlaneseq
  %v796 = vshrl.u32 %v795, 7
  %v797 = vsub.s32 0, %v796
  %v798 = vrot.slane %v793, %v797
  %v799 = vlaneseq
  %v800 = vshrl.u32 %v799, 7
  %v801 = vsub.s32 1, %v800
  %v802 = vrot.slane %v793, %v801
  %v803 = vlaneseq
  %v804 = vshrl.u32 %v803, 7
  %v805 = vsub.s32 2, %v804
  %v806 = vrot.slane %v793, %v805
  %v810 = vadd.f32 %v790, %v798
  %v811 = vadd.f32 %v791, %v802
  %v812 = vadd.f32 %v792, %v806
  %v813 = vmax.f32 %v810, 0.0
  %v814 = vmax.f32 %v811, 0.0
  %v815 = vmax.f32 %v812, 0.0
  %v816 = vpack.c.bf16 %v813, %v813
  %v817 = vpack.c.bf16 %v814, %v814
  %v818 = vpack.c.bf16 %v815, %v815
  %v819 = vld [vmem:[%s3] sm:$0xff]
  %v820 = vld [vmem:[%s3 + $0x8] sm:$0xff]
  %v821 = vld [vmem:[%s3 + $0x10] sm:$0xff]
  %v822 = vld [vmem:[%s3 + $0x18] sm:$0xff]
  %v823 = vld [vmem:[%s3 + $0x20] sm:$0xff]
  %v824 = vld [vmem:[%s3 + $0x28] sm:$0xff]
  %v825 = vld [vmem:[%s3 + $0x30] sm:$0xff]
  %v826 = vld [vmem:[%s3 + $0x38] sm:$0xff]
  %v827 = vld [vmem:[%s3 + $0x40] sm:$0xff]
  %v828 = vld [vmem:[%s3 + $0x48] sm:$0xff]
  %v829 = vld [vmem:[%s3 + $0x50] sm:$0xff]
  %v830 = vld [vmem:[%s3 + $0x58] sm:$0xff]
  %v831 = vld [vmem:[%s3 + $0x60] sm:$0xff]
  %v832 = vld [vmem:[%s3 + $0x68] sm:$0xff]
  %v833 = vld [vmem:[%s3 + $0x70] sm:$0xff]
  %v834 = vld [vmem:[%s3 + $0x78] sm:$0xff]
  %v835 = vld [vmem:[%s3 + $0x80] sm:$0xff]
  %v836 = vld [vmem:[%s3 + $0x88] sm:$0xff]
  %v837 = vld [vmem:[%s3 + $0x90] sm:$0xff]
  %v838 = vld [vmem:[%s3 + $0x98] sm:$0xff]
  %v839 = vld [vmem:[%s3 + $0xa0] sm:$0xff]
  %v840 = vld [vmem:[%s3 + $0xa8] sm:$0xff]
  %v841 = vld [vmem:[%s3 + $0xb0] sm:$0xff]
  %v842 = vld [vmem:[%s3 + $0xb8] sm:$0xff]
  %v843 = vld [vmem:[%s3 + $0xc0] sm:$0xff]
  %v844 = vld [vmem:[%s3 + $0xc8] sm:$0xff]
  %v845 = vld [vmem:[%s3 + $0xd0] sm:$0xff]
  %v846 = vld [vmem:[%s3 + $0xd8] sm:$0xff]
  %v847 = vld [vmem:[%s3 + $0xe0] sm:$0xff]
  %v848 = vld [vmem:[%s3 + $0xe8] sm:$0xff]
  %v849 = vld [vmem:[%s3 + $0xf0] sm:$0xff]
  %v850 = vld [vmem:[%s3 + $0xf8] sm:$0xff]
  %v851 = vld [vmem:[%s3 + $0x100] sm:$0xff]
  %v852 = vld [vmem:[%s3 + $0x108] sm:$0xff]
  %v853 = vld [vmem:[%s3 + $0x110] sm:$0xff]
  %v854 = vld [vmem:[%s3 + $0x118] sm:$0xff]
  %v855 = vld [vmem:[%s3 + $0x120] sm:$0xff]
  %v856 = vld [vmem:[%s3 + $0x128] sm:$0xff]
  %v857 = vld [vmem:[%s3 + $0x130] sm:$0xff]
  %v858 = vld [vmem:[%s3 + $0x138] sm:$0xff]
  %v859 = vld [vmem:[%s3 + $0x140] sm:$0xff]
  %v860 = vld [vmem:[%s3 + $0x148] sm:$0xff]
  %v861 = vld [vmem:[%s3 + $0x150] sm:$0xff]
  %v862 = vld [vmem:[%s3 + $0x158] sm:$0xff]
  %v863 = vld [vmem:[%s3 + $0x160] sm:$0xff]
  %v864 = vld [vmem:[%s3 + $0x168] sm:$0xff]
  %v865 = vld [vmem:[%s3 + $0x170] sm:$0xff]
  %v866 = vld [vmem:[%s3 + $0x178] sm:$0xff]
  %v867 = vld [vmem:[%s3 + $0x180] sm:$0xff]
  %v868 = vld [vmem:[%s3 + $0x188] sm:$0xff]
  %v869 = vld [vmem:[%s3 + $0x190] sm:$0xff]
  %v870 = vld [vmem:[%s3 + $0x198] sm:$0xff]
  %v871 = vld [vmem:[%s3 + $0x1a0] sm:$0xff]
  %v872 = vld [vmem:[%s3 + $0x1a8] sm:$0xff]
  %v873 = vld [vmem:[%s3 + $0x1b0] sm:$0xff]
  %v874 = vld [vmem:[%s3 + $0x1b8] sm:$0xff]
  %v875 = vld [vmem:[%s3 + $0x1c0] sm:$0xff]
  %v876 = vld [vmem:[%s3 + $0x1c8] sm:$0xff]
  %v877 = vld [vmem:[%s3 + $0x1d0] sm:$0xff]
  %v878 = vld [vmem:[%s3 + $0x1d8] sm:$0xff]
  %v879 = vld [vmem:[%s3 + $0x1e0] sm:$0xff]
  %v880 = vld [vmem:[%s3 + $0x1e8] sm:$0xff]
  %v881 = vld [vmem:[%s3 + $0x1f0] sm:$0xff]
  %v882 = vld [vmem:[%s3 + $0x1f8] sm:$0xff]
  %v883 = vld [vmem:[%s3 + $0x200] sm:$0xff]
  %v884 = vld [vmem:[%s3 + $0x208] sm:$0xff]
  %v885 = vld [vmem:[%s3 + $0x210] sm:$0xff]
  %v886 = vld [vmem:[%s3 + $0x218] sm:$0xff]
  %v887 = vld [vmem:[%s3 + $0x220] sm:$0xff]
  %v888 = vld [vmem:[%s3 + $0x228] sm:$0xff]
  %v889 = vld [vmem:[%s3 + $0x230] sm:$0xff]
  %v890 = vld [vmem:[%s3 + $0x238] sm:$0xff]
  %v891 = vld [vmem:[%s3 + $0x240] sm:$0xff]
  %v892 = vld [vmem:[%s3 + $0x248] sm:$0xff]
  %v893 = vld [vmem:[%s3 + $0x250] sm:$0xff]
  %v894 = vld [vmem:[%s3 + $0x258] sm:$0xff]
  %v895 = vld [vmem:[%s3 + $0x260] sm:$0xff]
  %v896 = vld [vmem:[%s3 + $0x268] sm:$0xff]
  %v897 = vld [vmem:[%s3 + $0x270] sm:$0xff]
  %v898 = vld [vmem:[%s3 + $0x278] sm:$0xff]
  %v899 = vld [vmem:[%s3 + $0x280] sm:$0xff]
  %v900 = vld [vmem:[%s3 + $0x288] sm:$0xff]
  %v901 = vld [vmem:[%s3 + $0x290] sm:$0xff]
  %v902 = vld [vmem:[%s3 + $0x298] sm:$0xff]
  %v903 = vld [vmem:[%s3 + $0x2a0] sm:$0xff]
  %v904 = vld [vmem:[%s3 + $0x2a8] sm:$0xff]
  %v905 = vld [vmem:[%s3 + $0x2b0] sm:$0xff]
  %v906 = vld [vmem:[%s3 + $0x2b8] sm:$0xff]
  %v907 = vld [vmem:[%s3 + $0x2c0] sm:$0xff]
  %v908 = vld [vmem:[%s3 + $0x2c8] sm:$0xff]
  %v909 = vld [vmem:[%s3 + $0x2d0] sm:$0xff]
  %v910 = vld [vmem:[%s3 + $0x2d8] sm:$0xff]
  %v911 = vld [vmem:[%s3 + $0x2e0] sm:$0xff]
  %v912 = vld [vmem:[%s3 + $0x2e8] sm:$0xff]
  %v913 = vld [vmem:[%s3 + $0x2f0] sm:$0xff]
  %v914 = vld [vmem:[%s3 + $0x2f8] sm:$0xff]
  %v1011 = vunpack.c.l.b16 %v819
  %v1012 = vunpack.c.h.b16 %v819
  %v1013 = vunpack.c.l.b16 %v820
  %v1014 = vunpack.c.h.b16 %v820
  %v1015 = vunpack.c.l.b16 %v821
  %v1016 = vunpack.c.h.b16 %v821
  %v1017 = vunpack.c.l.b16 %v822
  %v1018 = vunpack.c.h.b16 %v822
  %v1019 = vunpack.c.l.b16 %v823
  %v1020 = vunpack.c.h.b16 %v823
  %v1021 = vunpack.c.l.b16 %v824
  %v1022 = vunpack.c.h.b16 %v824
  %v1023 = vunpack.c.l.b16 %v825
  %v1024 = vunpack.c.h.b16 %v825
  %v1025 = vunpack.c.l.b16 %v826
  %v1026 = vunpack.c.h.b16 %v826
  %v1027 = vunpack.c.l.b16 %v827
  %v1028 = vunpack.c.h.b16 %v827
  %v1029 = vunpack.c.l.b16 %v828
  %v1030 = vunpack.c.h.b16 %v828
  %v1031 = vunpack.c.l.b16 %v829
  %v1032 = vunpack.c.h.b16 %v829
  %v1033 = vunpack.c.l.b16 %v830
  %v1034 = vunpack.c.h.b16 %v830
  %v1035 = vunpack.c.l.b16 %v831
  %v1036 = vunpack.c.h.b16 %v831
  %v1037 = vunpack.c.l.b16 %v832
  %v1038 = vunpack.c.h.b16 %v832
  %v1039 = vunpack.c.l.b16 %v833
  %v1040 = vunpack.c.h.b16 %v833
  %v1041 = vunpack.c.l.b16 %v834
  %v1042 = vunpack.c.h.b16 %v834
  %v1043 = vunpack.c.l.b16 %v835
  %v1044 = vunpack.c.h.b16 %v835
  %v1045 = vunpack.c.l.b16 %v836
  %v1046 = vunpack.c.h.b16 %v836
  %v1047 = vunpack.c.l.b16 %v837
  %v1048 = vunpack.c.h.b16 %v837
  %v1049 = vunpack.c.l.b16 %v838
  %v1050 = vunpack.c.h.b16 %v838
  %v1051 = vunpack.c.l.b16 %v839
  %v1052 = vunpack.c.h.b16 %v839
  %v1053 = vunpack.c.l.b16 %v840
  %v1054 = vunpack.c.h.b16 %v840
  %v1055 = vunpack.c.l.b16 %v841
  %v1056 = vunpack.c.h.b16 %v841
  %v1057 = vunpack.c.l.b16 %v842
  %v1058 = vunpack.c.h.b16 %v842
  %v1059 = vunpack.c.l.b16 %v843
  %v1060 = vunpack.c.h.b16 %v843
  %v1061 = vunpack.c.l.b16 %v844
  %v1062 = vunpack.c.h.b16 %v844
  %v1063 = vunpack.c.l.b16 %v845
  %v1064 = vunpack.c.h.b16 %v845
  %v1065 = vunpack.c.l.b16 %v846
  %v1066 = vunpack.c.h.b16 %v846
  %v1067 = vunpack.c.l.b16 %v847
  %v1068 = vunpack.c.h.b16 %v847
  %v1069 = vunpack.c.l.b16 %v848
  %v1070 = vunpack.c.h.b16 %v848
  %v1071 = vunpack.c.l.b16 %v849
  %v1072 = vunpack.c.h.b16 %v849
  %v1073 = vunpack.c.l.b16 %v850
  %v1074 = vunpack.c.h.b16 %v850
  %v1075 = vunpack.c.l.b16 %v851
  %v1076 = vunpack.c.h.b16 %v851
  %v1077 = vunpack.c.l.b16 %v852
  %v1078 = vunpack.c.h.b16 %v852
  %v1079 = vunpack.c.l.b16 %v853
  %v1080 = vunpack.c.h.b16 %v853
  %v1081 = vunpack.c.l.b16 %v854
  %v1082 = vunpack.c.h.b16 %v854
  %v1083 = vunpack.c.l.b16 %v855
  %v1084 = vunpack.c.h.b16 %v855
  %v1085 = vunpack.c.l.b16 %v856
  %v1086 = vunpack.c.h.b16 %v856
  %v1087 = vunpack.c.l.b16 %v857
  %v1088 = vunpack.c.h.b16 %v857
  %v1089 = vunpack.c.l.b16 %v858
  %v1090 = vunpack.c.h.b16 %v858
  %v1091 = vunpack.c.l.b16 %v859
  %v1092 = vunpack.c.h.b16 %v859
  %v1093 = vunpack.c.l.b16 %v860
  %v1094 = vunpack.c.h.b16 %v860
  %v1095 = vunpack.c.l.b16 %v861
  %v1096 = vunpack.c.h.b16 %v861
  %v1097 = vunpack.c.l.b16 %v862
  %v1098 = vunpack.c.h.b16 %v862
  %v1099 = vunpack.c.l.b16 %v863
  %v1100 = vunpack.c.h.b16 %v863
  %v1101 = vunpack.c.l.b16 %v864
  %v1102 = vunpack.c.h.b16 %v864
  %v1103 = vunpack.c.l.b16 %v865
  %v1104 = vunpack.c.h.b16 %v865
  %v1105 = vunpack.c.l.b16 %v866
  %v1106 = vunpack.c.h.b16 %v866
  %v1107 = vunpack.c.l.b16 %v867
  %v1108 = vunpack.c.h.b16 %v867
  %v1109 = vunpack.c.l.b16 %v868
  %v1110 = vunpack.c.h.b16 %v868
  %v1111 = vunpack.c.l.b16 %v869
  %v1112 = vunpack.c.h.b16 %v869
  %v1113 = vunpack.c.l.b16 %v870
  %v1114 = vunpack.c.h.b16 %v870
  %v1115 = vunpack.c.l.b16 %v871
  %v1116 = vunpack.c.h.b16 %v871
  %v1117 = vunpack.c.l.b16 %v872
  %v1118 = vunpack.c.h.b16 %v872
  %v1119 = vunpack.c.l.b16 %v873
  %v1120 = vunpack.c.h.b16 %v873
  %v1121 = vunpack.c.l.b16 %v874
  %v1122 = vunpack.c.h.b16 %v874
  %v1123 = vunpack.c.l.b16 %v875
  %v1124 = vunpack.c.h.b16 %v875
  %v1125 = vunpack.c.l.b16 %v876
  %v1126 = vunpack.c.h.b16 %v876
  %v1127 = vunpack.c.l.b16 %v877
  %v1128 = vunpack.c.h.b16 %v877
  %v1129 = vunpack.c.l.b16 %v878
  %v1130 = vunpack.c.h.b16 %v878
  %v1131 = vunpack.c.l.b16 %v879
  %v1132 = vunpack.c.h.b16 %v879
  %v1133 = vunpack.c.l.b16 %v880
  %v1134 = vunpack.c.h.b16 %v880
  %v1135 = vunpack.c.l.b16 %v881
  %v1136 = vunpack.c.h.b16 %v881
  %v1137 = vunpack.c.l.b16 %v882
  %v1138 = vunpack.c.h.b16 %v882
  %v1139 = vunpack.c.l.b16 %v883
  %v1140 = vunpack.c.h.b16 %v883
  %v1141 = vunpack.c.l.b16 %v884
  %v1142 = vunpack.c.h.b16 %v884
  %v1143 = vunpack.c.l.b16 %v885
  %v1144 = vunpack.c.h.b16 %v885
  %v1145 = vunpack.c.l.b16 %v886
  %v1146 = vunpack.c.h.b16 %v886
  %v1147 = vunpack.c.l.b16 %v887
  %v1148 = vunpack.c.h.b16 %v887
  %v1149 = vunpack.c.l.b16 %v888
  %v1150 = vunpack.c.h.b16 %v888
  %v1151 = vunpack.c.l.b16 %v889
  %v1152 = vunpack.c.h.b16 %v889
  %v1153 = vunpack.c.l.b16 %v890
  %v1154 = vunpack.c.h.b16 %v890
  %v1155 = vunpack.c.l.b16 %v891
  %v1156 = vunpack.c.h.b16 %v891
  %v1157 = vunpack.c.l.b16 %v892
  %v1158 = vunpack.c.h.b16 %v892
  %v1159 = vunpack.c.l.b16 %v893
  %v1160 = vunpack.c.h.b16 %v893
  %v1161 = vunpack.c.l.b16 %v894
  %v1162 = vunpack.c.h.b16 %v894
  %v1163 = vunpack.c.l.b16 %v895
  %v1164 = vunpack.c.h.b16 %v895
  %v1165 = vunpack.c.l.b16 %v896
  %v1166 = vunpack.c.h.b16 %v896
  %v1167 = vunpack.c.l.b16 %v897
  %v1168 = vunpack.c.h.b16 %v897
  %v1169 = vunpack.c.l.b16 %v898
  %v1170 = vunpack.c.h.b16 %v898
  %v1171 = vunpack.c.l.b16 %v899
  %v1172 = vunpack.c.h.b16 %v899
  %v1173 = vunpack.c.l.b16 %v900
  %v1174 = vunpack.c.h.b16 %v900
  %v1175 = vunpack.c.l.b16 %v901
  %v1176 = vunpack.c.h.b16 %v901
  %v1177 = vunpack.c.l.b16 %v902
  %v1178 = vunpack.c.h.b16 %v902
  %v1179 = vunpack.c.l.b16 %v903
  %v1180 = vunpack.c.h.b16 %v903
  %v1181 = vunpack.c.l.b16 %v904
  %v1182 = vunpack.c.h.b16 %v904
  %v1183 = vunpack.c.l.b16 %v905
  %v1184 = vunpack.c.h.b16 %v905
  %v1185 = vunpack.c.l.b16 %v906
  %v1186 = vunpack.c.h.b16 %v906
  %v1187 = vunpack.c.l.b16 %v907
  %v1188 = vunpack.c.h.b16 %v907
  %v1189 = vunpack.c.l.b16 %v908
  %v1190 = vunpack.c.h.b16 %v908
  %v1191 = vunpack.c.l.b16 %v909
  %v1192 = vunpack.c.h.b16 %v909
  %v1193 = vunpack.c.l.b16 %v910
  %v1194 = vunpack.c.h.b16 %v910
  %v1195 = vunpack.c.l.b16 %v911
  %v1196 = vunpack.c.h.b16 %v911
  %v1197 = vunpack.c.l.b16 %v912
  %v1198 = vunpack.c.h.b16 %v912
  %v1199 = vunpack.c.l.b16 %v913
  %v1200 = vunpack.c.h.b16 %v913
  %v1201 = vunpack.c.l.b16 %v914
  %v1202 = vunpack.c.h.b16 %v914
  %v1203 = vpack.c.b16 %v1015, %v1011
  %v1204 = vpack.c.b16 %v1016, %v1012
  %v1205 = vpack.c.b16 %v1017, %v1013
  %v1206 = vpack.c.b16 %v1018, %v1014
  %v1207 = vpack.c.b16 %v1023, %v1019
  %v1208 = vpack.c.b16 %v1024, %v1020
  %v1209 = vpack.c.b16 %v1025, %v1021
  %v1210 = vpack.c.b16 %v1026, %v1022
  %v1211 = vpack.c.b16 %v1031, %v1027
  %v1212 = vpack.c.b16 %v1032, %v1028
  %v1213 = vpack.c.b16 %v1033, %v1029
  %v1214 = vpack.c.b16 %v1034, %v1030
  %v1215 = vpack.c.b16 %v1039, %v1035
  %v1216 = vpack.c.b16 %v1040, %v1036
  %v1217 = vpack.c.b16 %v1041, %v1037
  %v1218 = vpack.c.b16 %v1042, %v1038
  %v1219 = vpack.c.b16 %v1047, %v1043
  %v1220 = vpack.c.b16 %v1048, %v1044
  %v1221 = vpack.c.b16 %v1049, %v1045
  %v1222 = vpack.c.b16 %v1050, %v1046
  %v1223 = vpack.c.b16 %v1055, %v1051
  %v1224 = vpack.c.b16 %v1056, %v1052
  %v1225 = vpack.c.b16 %v1057, %v1053
  %v1226 = vpack.c.b16 %v1058, %v1054
  %v1227 = vpack.c.b16 %v1063, %v1059
  %v1228 = vpack.c.b16 %v1064, %v1060
  %v1229 = vpack.c.b16 %v1065, %v1061
  %v1230 = vpack.c.b16 %v1066, %v1062
  %v1231 = vpack.c.b16 %v1071, %v1067
  %v1232 = vpack.c.b16 %v1072, %v1068
  %v1233 = vpack.c.b16 %v1073, %v1069
  %v1234 = vpack.c.b16 %v1074, %v1070
  %v1235 = vpack.c.b16 %v1079, %v1075
  %v1236 = vpack.c.b16 %v1080, %v1076
  %v1237 = vpack.c.b16 %v1081, %v1077
  %v1238 = vpack.c.b16 %v1082, %v1078
  %v1239 = vpack.c.b16 %v1087, %v1083
  %v1240 = vpack.c.b16 %v1088, %v1084
  %v1241 = vpack.c.b16 %v1089, %v1085
  %v1242 = vpack.c.b16 %v1090, %v1086
  %v1243 = vpack.c.b16 %v1095, %v1091
  %v1244 = vpack.c.b16 %v1096, %v1092
  %v1245 = vpack.c.b16 %v1097, %v1093
  %v1246 = vpack.c.b16 %v1098, %v1094
  %v1247 = vpack.c.b16 %v1103, %v1099
  %v1248 = vpack.c.b16 %v1104, %v1100
  %v1249 = vpack.c.b16 %v1105, %v1101
  %v1250 = vpack.c.b16 %v1106, %v1102
  %v1251 = vpack.c.b16 %v1111, %v1107
  %v1252 = vpack.c.b16 %v1112, %v1108
  %v1253 = vpack.c.b16 %v1113, %v1109
  %v1254 = vpack.c.b16 %v1114, %v1110
  %v1255 = vpack.c.b16 %v1119, %v1115
  %v1256 = vpack.c.b16 %v1120, %v1116
  %v1257 = vpack.c.b16 %v1121, %v1117
  %v1258 = vpack.c.b16 %v1122, %v1118
  %v1259 = vpack.c.b16 %v1127, %v1123
  %v1260 = vpack.c.b16 %v1128, %v1124
  %v1261 = vpack.c.b16 %v1129, %v1125
  %v1262 = vpack.c.b16 %v1130, %v1126
  %v1263 = vpack.c.b16 %v1135, %v1131
  %v1264 = vpack.c.b16 %v1136, %v1132
  %v1265 = vpack.c.b16 %v1137, %v1133
  %v1266 = vpack.c.b16 %v1138, %v1134
  %v1267 = vpack.c.b16 %v1143, %v1139
  %v1268 = vpack.c.b16 %v1144, %v1140
  %v1269 = vpack.c.b16 %v1145, %v1141
  %v1270 = vpack.c.b16 %v1146, %v1142
  %v1271 = vpack.c.b16 %v1151, %v1147
  %v1272 = vpack.c.b16 %v1152, %v1148
  %v1273 = vpack.c.b16 %v1153, %v1149
  %v1274 = vpack.c.b16 %v1154, %v1150
  %v1275 = vpack.c.b16 %v1159, %v1155
  %v1276 = vpack.c.b16 %v1160, %v1156
  %v1277 = vpack.c.b16 %v1161, %v1157
  %v1278 = vpack.c.b16 %v1162, %v1158
  %v1279 = vpack.c.b16 %v1167, %v1163
  %v1280 = vpack.c.b16 %v1168, %v1164
  %v1281 = vpack.c.b16 %v1169, %v1165
  %v1282 = vpack.c.b16 %v1170, %v1166
  %v1283 = vpack.c.b16 %v1175, %v1171
  %v1284 = vpack.c.b16 %v1176, %v1172
  %v1285 = vpack.c.b16 %v1177, %v1173
  %v1286 = vpack.c.b16 %v1178, %v1174
  %v1287 = vpack.c.b16 %v1183, %v1179
  %v1288 = vpack.c.b16 %v1184, %v1180
  %v1289 = vpack.c.b16 %v1185, %v1181
  %v1290 = vpack.c.b16 %v1186, %v1182
  %v1291 = vpack.c.b16 %v1191, %v1187
  %v1292 = vpack.c.b16 %v1192, %v1188
  %v1293 = vpack.c.b16 %v1193, %v1189
  %v1294 = vpack.c.b16 %v1194, %v1190
  %v1295 = vpack.c.b16 %v1199, %v1195
  %v1296 = vpack.c.b16 %v1200, %v1196
  %v1297 = vpack.c.b16 %v1201, %v1197
  %v1298 = vpack.c.b16 %v1202, %v1198
  %1395 = vmatprep.subr.bf16.mxu0 %v1232
  %1396 = vmatpush1.bf16.msra.mxu0 %v1231
  %1397 = vmatprep.subr.bf16.mxu0 %v1228
  %1398 = vmatpush1.bf16.msra.mxu0 %v1227
  %1399 = vmatprep.subr.bf16.mxu0 %v1224
  %1400 = vmatpush1.bf16.msra.mxu0 %v1223
  %1401 = vmatprep.subr.bf16.mxu0 %v1220
  %1402 = vmatpush1.bf16.msra.mxu0 %v1219
  %1403 = vmatprep.subr.bf16.mxu0 %v1216
  %1404 = vmatpush1.bf16.msra.mxu0 %v1215
  %1405 = vmatprep.subr.bf16.mxu0 %v1212
  %1406 = vmatpush1.bf16.msra.mxu0 %v1211
  %1407 = vmatprep.subr.bf16.mxu0 %v1208
  %1408 = vmatpush1.bf16.msra.mxu0 %v1207
  %1409 = vmatprep.subr.bf16.mxu0 %v1204
  %1410 = vmatpush1.bf16.msra.mxu0 %v1203
  %1411 = vmatprep.subr.bf16.mxu0 %v1264
  %1412 = vmatpush2.bf16.msra.mxu0 %v1263
  %1413 = vmatprep.subr.bf16.mxu0 %v1260
  %1414 = vmatpush2.bf16.msra.mxu0 %v1259
  %1415 = vmatprep.subr.bf16.mxu0 %v1256
  %1416 = vmatpush2.bf16.msra.mxu0 %v1255
  %1417 = vmatprep.subr.bf16.mxu0 %v1252
  %1418 = vmatpush2.bf16.msra.mxu0 %v1251
  %1419 = vmatprep.subr.bf16.mxu0 %v1248
  %1420 = vmatpush2.bf16.msra.mxu0 %v1247
  %1421 = vmatprep.subr.bf16.mxu0 %v1244
  %1422 = vmatpush2.bf16.msra.mxu0 %v1243
  %1423 = vmatprep.subr.bf16.mxu0 %v1240
  %1424 = vmatpush2.bf16.msra.mxu0 %v1239
  %1425 = vmatprep.subr.bf16.mxu0 %v1236
  %1426 = vmatpush2.bf16.msra.mxu0 %v1235
  %1427 = vmatprep.mubr.bf16.mxu0 %v817
  %1428 = vmatmul.mubr.bf16.gmra.mxu0 %v816
  %v1429 = vpop.f32.mrf.mxu0
  %v1430 = vadd.f32 0.0, %v1429
  %v1431 = vpop.f32.mrf.mxu0
  %v1432 = vadd.f32 0.0, %v1431
  %v1433 = vpop.f32.mrf.mxu0
  %v1434 = vpop.f32.mrf.mxu0
  %1435 = vdwg.mxu0
  %1436 = vmatprep.subr.bf16.mxu0 %v1296
  %1437 = vmatpush1.bf16.msra.mxu0 %v1295
  %1438 = vmatprep.subr.bf16.mxu0 %v1292
  %1439 = vmatpush1.bf16.msra.mxu0 %v1291
  %1440 = vmatprep.subr.bf16.mxu0 %v1288
  %1441 = vmatpush1.bf16.msra.mxu0 %v1287
  %1442 = vmatprep.subr.bf16.mxu0 %v1284
  %1443 = vmatpush1.bf16.msra.mxu0 %v1283
  %1444 = vmatprep.subr.bf16.mxu0 %v1280
  %1445 = vmatpush1.bf16.msra.mxu0 %v1279
  %1446 = vmatprep.subr.bf16.mxu0 %v1276
  %1447 = vmatpush1.bf16.msra.mxu0 %v1275
  %1448 = vmatprep.subr.bf16.mxu0 %v1272
  %1449 = vmatpush1.bf16.msra.mxu0 %v1271
  %1450 = vmatprep.subr.bf16.mxu0 %v1268
  %1451 = vmatpush1.bf16.msra.mxu0 %v1267
  %1452 = vmatprep.subr.bf16.mxu0 0
  %1453 = vmatpush2.bf16.msra.mxu0 0
  %1454 = vmatprep.subr.bf16.mxu0 0
  %1455 = vmatpush2.bf16.msra.mxu0 0
  %1456 = vmatprep.subr.bf16.mxu0 0
  %1457 = vmatpush2.bf16.msra.mxu0 0
  %1458 = vmatprep.subr.bf16.mxu0 0
  %1459 = vmatpush2.bf16.msra.mxu0 0
  %1460 = vmatprep.subr.bf16.mxu0 0
  %1461 = vmatpush2.bf16.msra.mxu0 0
  %1462 = vmatprep.subr.bf16.mxu0 0
  %1463 = vmatpush2.bf16.msra.mxu0 0
  %1464 = vmatprep.subr.bf16.mxu0 0
  %1465 = vmatpush2.bf16.msra.mxu0 0
  %1466 = vmatprep.subr.bf16.mxu0 0
  %1467 = vmatpush2.bf16.msra.mxu0 0
  %1468 = vmatprep.mubr.bf16.mxu0 0
  %1469 = vmatmul.mubr.bf16.gmra.mxu0 %v818
  %v1470 = vpop.f32.mrf.mxu0
  %v1471 = vadd.f32 %v1430, %v1470
  %v1472 = vpop.f32.mrf.mxu0
  %v1473 = vadd.f32 %v1432, %v1472
  %v1474 = vpop.f32.mrf.mxu0
  %v1475 = vpop.f32.mrf.mxu0
  %1476 = vdwg.mxu0
  %1477 = vmatprep.subr.bf16.mxu0 %v1234
  %1478 = vmatpush1.bf16.msra.mxu0 %v1233
  %1479 = vmatprep.subr.bf16.mxu0 %v1230
  %1480 = vmatpush1.bf16.msra.mxu0 %v1229
  %1481 = vmatprep.subr.bf16.mxu0 %v1226
  %1482 = vmatpush1.bf16.msra.mxu0 %v1225
  %1483 = vmatprep.subr.bf16.mxu0 %v1222
  %1484 = vmatpush1.bf16.msra.mxu0 %v1221
  %1485 = vmatprep.subr.bf16.mxu0 %v1218
  %1486 = vmatpush1.bf16.msra.mxu0 %v1217
  %1487 = vmatprep.subr.bf16.mxu0 %v1214
  %1488 = vmatpush1.bf16.msra.mxu0 %v1213
  %1489 = vmatprep.subr.bf16.mxu0 %v1210
  %1490 = vmatpush1.bf16.msra.mxu0 %v1209
  %1491 = vmatprep.subr.bf16.mxu0 %v1206
  %1492 = vmatpush1.bf16.msra.mxu0 %v1205
  %1493 = vmatprep.subr.bf16.mxu0 %v1266
  %1494 = vmatpush2.bf16.msra.mxu0 %v1265
  %1495 = vmatprep.subr.bf16.mxu0 %v1262
  %1496 = vmatpush2.bf16.msra.mxu0 %v1261
  %1497 = vmatprep.subr.bf16.mxu0 %v1258
  %1498 = vmatpush2.bf16.msra.mxu0 %v1257
  %1499 = vmatprep.subr.bf16.mxu0 %v1254
  %1500 = vmatpush2.bf16.msra.mxu0 %v1253
  %1501 = vmatprep.subr.bf16.mxu0 %v1250
  %1502 = vmatpush2.bf16.msra.mxu0 %v1249
  %1503 = vmatprep.subr.bf16.mxu0 %v1246
  %1504 = vmatpush2.bf16.msra.mxu0 %v1245
  %1505 = vmatprep.subr.bf16.mxu0 %v1242
  %1506 = vmatpush2.bf16.msra.mxu0 %v1241
  %1507 = vmatprep.subr.bf16.mxu0 %v1238
  %1508 = vmatpush2.bf16.msra.mxu0 %v1237
  %1509 = vmatprep.mubr.bf16.mxu0 %v817
  %1510 = vmatmul.mubr.bf16.gmra.mxu0 %v816
  %v1511 = vpop.f32.mrf.mxu0
  %v1512 = vadd.f32 0.0, %v1511
  %v1513 = vpop.f32.mrf.mxu0
  %v1514 = vadd.f32 0.0, %v1513
  %v1515 = vpop.f32.mrf.mxu0
  %v1516 = vpop.f32.mrf.mxu0
  %1517 = vdwg.mxu0
  %1518 = vmatprep.subr.bf16.mxu0 %v1298
  %1519 = vmatpush1.bf16.msra.mxu0 %v1297
  %1520 = vmatprep.subr.bf16.mxu0 %v1294
  %1521 = vmatpush1.bf16.msra.mxu0 %v1293
  %1522 = vmatprep.subr.bf16.mxu0 %v1290
  %1523 = vmatpush1.bf16.msra.mxu0 %v1289
  %1524 = vmatprep.subr.bf16.mxu0 %v1286
  %1525 = vmatpush1.bf16.msra.mxu0 %v1285
  %1526 = vmatprep.subr.bf16.mxu0 %v1282
  %1527 = vmatpush1.bf16.msra.mxu0 %v1281
  %1528 = vmatprep.subr.bf16.mxu0 %v1278
  %1529 = vmatpush1.bf16.msra.mxu0 %v1277
  %1530 = vmatprep.subr.bf16.mxu0 %v1274
  %1531 = vmatpush1.bf16.msra.mxu0 %v1273
  %1532 = vmatprep.subr.bf16.mxu0 %v1270
  %1533 = vmatpush1.bf16.msra.mxu0 %v1269
  %1534 = vmatprep.subr.bf16.mxu0 0
  %1535 = vmatpush2.bf16.msra.mxu0 0
  %1536 = vmatprep.subr.bf16.mxu0 0
  %1537 = vmatpush2.bf16.msra.mxu0 0
  %1538 = vmatprep.subr.bf16.mxu0 0
  %1539 = vmatpush2.bf16.msra.mxu0 0
  %1540 = vmatprep.subr.bf16.mxu0 0
  %1541 = vmatpush2.bf16.msra.mxu0 0
  %1542 = vmatprep.subr.bf16.mxu0 0
  %1543 = vmatpush2.bf16.msra.mxu0 0
  %1544 = vmatprep.subr.bf16.mxu0 0
  %1545 = vmatpush2.bf16.msra.mxu0 0
  %1546 = vmatprep.subr.bf16.mxu0 0
  %1547 = vmatpush2.bf16.msra.mxu0 0
  %1548 = vmatprep.subr.bf16.mxu0 0
  %1549 = vmatpush2.bf16.msra.mxu0 0
  %1550 = vmatprep.mubr.bf16.mxu0 0
  %1551 = vmatmul.mubr.bf16.gmra.mxu0 %v818
  %v1552 = vpop.f32.mrf.mxu0
  %v1553 = vadd.f32 %v1512, %v1552
  %v1554 = vpop.f32.mrf.mxu0
  %v1555 = vadd.f32 %v1514, %v1554
  %v1556 = vpop.f32.mrf.mxu0
  %v1557 = vpop.f32.mrf.mxu0
  %1558 = vdwg.mxu0
  %v1559 = vmax.f32 %v1471, %v1473
  %v1560 = vmax.f32 %v1559, %v1553
  %v1561 = vmax.f32 %v1560, %v1555
  %v1562 = vld [vmem:[%s4] sm:$0x1]
  %v1564 = vlaneseq
  %v1565 = vshrl.u32 %v1564, 7
  %v1566 = vsub.s32 0, %v1565
  %v1567 = vrot.slane %v1562, %v1566
  %v1569 = vadd.f32 %v1561, %v1567
  %v1570 = vmax.f32 %v1569, 0.0
  %v1571 = vpack.c.bf16 %v1570, %v1570
  %v1572 = vld [vmem:[%s5] sm:$0xf]
  %v1573 = vld [vmem:[%s5 + $0x4] sm:$0xf]
  %v1574 = vld [vmem:[%s5 + $0x8] sm:$0xf]
  %v1575 = vld [vmem:[%s5 + $0xc] sm:$0xf]
  %v1576 = vld [vmem:[%s5 + $0x10] sm:$0xf]
  %v1577 = vld [vmem:[%s5 + $0x14] sm:$0xf]
  %v1578 = vld [vmem:[%s5 + $0x18] sm:$0xf]
  %v1579 = vld [vmem:[%s5 + $0x1c] sm:$0xf]
  %v1580 = vld [vmem:[%s5 + $0x20] sm:$0xf]
  %v1581 = vld [vmem:[%s5 + $0x24] sm:$0xf]
  %v1582 = vld [vmem:[%s5 + $0x28] sm:$0xf]
  %v1583 = vld [vmem:[%s5 + $0x2c] sm:$0xf]
  %v1584 = vld [vmem:[%s5 + $0x30] sm:$0xf]
  %v1585 = vld [vmem:[%s5 + $0x34] sm:$0xf]
  %v1586 = vld [vmem:[%s5 + $0x38] sm:$0xf]
  %v1587 = vld [vmem:[%s5 + $0x3c] sm:$0xf]
  %v1588 = vld [vmem:[%s6] sm:$0x1]
  %v1590 = vlaneseq
  %v1591 = vshrl.u32 %v1590, 7
  %v1592 = vsub.s32 0, %v1591
  %v1593 = vrot.slane %v1588, %v1592
  %v1611 = vunpack.c.l.b16 %v1572
  %v1612 = vunpack.c.l.b16 %v1573
  %v1613 = vunpack.c.l.b16 %v1574
  %v1614 = vunpack.c.l.b16 %v1575
  %v1615 = vunpack.c.l.b16 %v1576
  %v1616 = vunpack.c.l.b16 %v1577
  %v1617 = vunpack.c.l.b16 %v1578
  %v1618 = vunpack.c.l.b16 %v1579
  %v1619 = vunpack.c.l.b16 %v1580
  %v1620 = vunpack.c.l.b16 %v1581
  %v1621 = vunpack.c.l.b16 %v1582
  %v1622 = vunpack.c.l.b16 %v1583
  %v1623 = vunpack.c.l.b16 %v1584
  %v1624 = vunpack.c.l.b16 %v1585
  %v1625 = vunpack.c.l.b16 %v1586
  %v1626 = vunpack.c.l.b16 %v1587
  %v1627 = vpack.c.b16 %v1612, %v1611
  %v1628 = vpack.c.b16 %v1614, %v1613
  %v1629 = vpack.c.b16 %v1616, %v1615
  %v1630 = vpack.c.b16 %v1618, %v1617
  %v1631 = vpack.c.b16 %v1620, %v1619
  %v1632 = vpack.c.b16 %v1622, %v1621
  %v1633 = vpack.c.b16 %v1624, %v1623
  %v1634 = vpack.c.b16 %v1626, %v1625
  %1643 = vmatprep.subr.bf16.mxu0 0
  %1644 = vmatpush1.bf16.msra.mxu0 %v1634
  %1645 = vmatprep.subr.bf16.mxu0 0
  %1646 = vmatpush1.bf16.msra.mxu0 %v1633
  %1647 = vmatprep.subr.bf16.mxu0 0
  %1648 = vmatpush1.bf16.msra.mxu0 %v1632
  %1649 = vmatprep.subr.bf16.mxu0 0
  %1650 = vmatpush1.bf16.msra.mxu0 %v1631
  %1651 = vmatprep.subr.bf16.mxu0 0
  %1652 = vmatpush1.bf16.msra.mxu0 %v1630
  %1653 = vmatprep.subr.bf16.mxu0 0
  %1654 = vmatpush1.bf16.msra.mxu0 %v1629
  %1655 = vmatprep.subr.bf16.mxu0 0
  %1656 = vmatpush1.bf16.msra.mxu0 %v1628
  %1657 = vmatprep.subr.bf16.mxu0 0
  %1658 = vmatpush1.bf16.msra.mxu0 %v1627
  %1659 = vmatprep.subr.bf16.mxu0 0
  %1660 = vmatpush2.bf16.msra.mxu0 0
  %1661 = vmatprep.subr.bf16.mxu0 0
  %1662 = vmatpush2.bf16.msra.mxu0 0
  %1663 = vmatprep.subr.bf16.mxu0 0
  %1664 = vmatpush2.bf16.msra.mxu0 0
  %1665 = vmatprep.subr.bf16.mxu0 0
  %1666 = vmatpush2.bf16.msra.mxu0 0
  %1667 = vmatprep.subr.bf16.mxu0 0
  %1668 = vmatpush2.bf16.msra.mxu0 0
  %1669 = vmatprep.subr.bf16.mxu0 0
  %1670 = vmatpush2.bf16.msra.mxu0 0
  %1671 = vmatprep.subr.bf16.mxu0 0
  %1672 = vmatpush2.bf16.msra.mxu0 0
  %1673 = vmatprep.subr.bf16.mxu0 0
  %1674 = vmatpush2.bf16.msra.mxu0 0
  %1675 = vmatprep.mubr.bf16.mxu0 0
  %1676 = vmatmul.mubr.bf16.gmra.mxu0 %v1571
  %v1677 = vpop.f32.mrf.mxu0
  %v1678 = vadd.f32 %v1593, %v1677
  %v1679 = vpop.f32.mrf.mxu0
  %v1680 = vpop.f32.mrf.mxu0
  %v1681 = vpop.f32.mrf.mxu0
  %1682 = vdwg.mxu0
  %vm1683 = vcmask 23552
  %1684 = vst.msk [vmem:[%s7] sm:$0xff] %vm1683, %v1678
  // Predicated region
  $region30: #{gequivariant_nn_forward.1} parent=0 // pred_check
    _
  $region31: #{gequivariant_nn_forward.1} parent=0 // pred_check_branch
    %1686 = sbr.rel (0) target = $region33
  $region32: #{gequivariant_nn_forward.1} parent=0 // pred_region
    _
  $region33: #{gequivariant_nn_forward.1} parent=0 // pred_fallthru
    _
  // Predicated region
  $region34: #{gequivariant_nn_forward.1} parent=0 // pred_check
    _
  $region35: #{gequivariant_nn_forward.1} parent=0 // pred_check_branch
    %1688 = sbr.rel (0) target = $region37
  $region36: #{gequivariant_nn_forward.1} parent=0 // pred_region
    _
  $region37: #{gequivariant_nn_forward.1} parent=0 // pred_fallthru
    _

</llo_original>
